<compile_context>
chip_gen: v6e
topology: v6e:2x2x1
jax: 0.10.0
libtpu: 0.0.40
codegen_flags: <defaults>
</compile_context>

<pallas_src>
import functools

import jax
import jax.numpy as jnp
from jax.experimental import pallas as pl
from jax.experimental.pallas import tpu as pltpu


def _ffn_kernel(*refs, training, keep_prob, use_bf16_matmul):
    use_dropout = training and 0.0 < keep_prob < 1.0
    if use_dropout:
        x_ref, w1_ref, b1_ref, w2_ref, b2_ref, bits_ref, o_ref, acc_ref = refs
    else:
        x_ref, w1_ref, b1_ref, w2_ref, b2_ref, o_ref, acc_ref = refs
        bits_ref = None

    h_idx = pl.program_id(1)

    @pl.when(h_idx == 0)
    def _():
        acc_ref[...] = jnp.zeros_like(acc_ref)

    in_dtype = x_ref.dtype
    mm_dtype = (jnp.bfloat16
                if (use_bf16_matmul and in_dtype == jnp.float32) else in_dtype)
    prec = (jax.lax.Precision.HIGHEST if mm_dtype == jnp.float32
            else jax.lax.Precision.DEFAULT)

    x = x_ref[...].astype(mm_dtype)      # (tm, E)
    w1 = w1_ref[...].astype(mm_dtype)    # (E, Hc)
    w2 = w2_ref[...].astype(mm_dtype)    # (Hc, E)

    # ff1 chunk: x @ W1^T[:, c] + b1[c], ReLU  (MXU matmul, f32 accumulate).
    h = jnp.dot(x, w1, preferred_element_type=jnp.float32, precision=prec)
    h = h + b1_ref[...].astype(jnp.float32)        # broadcast (1, Hc) over rows
    h = jnp.maximum(h, 0.0)

    # Dropout (training only; static branch). Mask only — the 1/keep_prob scale
    # is applied once on the (tm, E) output, not on every (tm, Hc) element.
    if training and keep_prob < 1.0:
        if keep_prob <= 0.0:
            h = jnp.zeros_like(h)
        else:
            thresh = jnp.uint32(min(int(round(keep_prob * 4294967296.0)),
                                    4294967295))
            h = jnp.where(bits_ref[...] < thresh, h, 0.0)

    # ff2 chunk: accumulate into the (tm, E) f32 scratch.
    acc_ref[...] += jnp.dot(h.astype(mm_dtype), w2,
                            preferred_element_type=jnp.float32, precision=prec)

    @pl.when(h_idx == pl.num_programs(1) - 1)
    def _():
        y = acc_ref[...]
        if training and 0.0 < keep_prob < 1.0:
            y = y * (1.0 / keep_prob)
        y = y + b2_ref[...].astype(jnp.float32)
        o_ref[...] = y.astype(o_ref.dtype)


def _vmem_capacity_bytes():
    try:
        cap = int(pltpu.get_tpu_info().vmem_capacity_bytes)
        if cap > 0:
            return cap
    except Exception:
        pass
    return 64 * 1024 * 1024   # conservative default: v7x per-TC VMEM


def _choose_tm(M, target):
    # MXU-filling row tile on large M; on small M split into >=2 tiles (8-row
    # aligned) so the "parallel" grid axis can feed both v7x TensorCores.
    if M <= 8:
        return M
    if M <= target:
        half = -(-M // 2)
        return int(min(M, ((half + 7) // 8) * 8))
    return target


def _choose_th(H, target):
    # Largest multiple-of-128 divisor of H not exceeding target: keeps every
    # weight/bias block lane-aligned and avoids padded H reads in the accumulator.
    if H <= target:
        return H
    c = (target // 128) * 128
    while c >= 128:
        if H % c == 0:
            return c
        c -= 128
    return H


def feed_forward(x, w1_t, b1, w2_t, b2, *, p=0.1, training=False, seed=0,
                 tm=None, th=None, use_bf16_matmul=False, vmem_limit_bytes=None):
    """x: (B, S, E); w1_t: (E, H) = ff1.weight.T; b1: (H,);
       w2_t: (H, E) = ff2.weight.T; b2: (E,)."""
    B, S, E = x.shape
    H = w1_t.shape[1]
    assert w1_t.shape == (E, H) and w2_t.shape == (H, E)
    assert b1.shape == (H,) and b2.shape == (E,)
    M = B * S
    x2d = x.reshape(M, E)

    vmem_cap = _vmem_capacity_bytes()
    if vmem_limit_bytes is None:
        vmem_limit_bytes = int(vmem_cap * 0.75)     # ~48 MiB v7x, ~96 MiB v5e/v6e
    tm_target = 512 if vmem_cap >= 96 * 1024 * 1024 else 256
    tm = _choose_tm(M, tm_target) if tm is None else max(1, min(int(tm), M))
    th = _choose_th(H, 512 if th is None else int(th))

    keep_prob = 1.0 - float(p)
    use_dropout = training and 0.0 < keep_prob < 1.0

    b1_2d = b1.reshape(1, H)
    b2_2d = b2.reshape(1, E)

    grid = (pl.cdiv(M, tm), pl.cdiv(H, th))

    in_specs = [
        pl.BlockSpec((tm, E), lambda i, h: (i, 0)),   # x row tile (pipelined)
        pl.BlockSpec((E, th), lambda i, h: (0, h)),   # W1^T H-chunk (streamed)
        pl.BlockSpec((1, th), lambda i, h: (0, h)),   # b1 chunk
        pl.BlockSpec((th, E), lambda i, h: (h, 0)),   # W2^T H-chunk (streamed)
        pl.BlockSpec((1, E), lambda i, h: (0, 0)),    # b2 (grid-invariant)
    ]
    args = [x2d, w1_t, b1_2d, w2_t, b2_2d]
    if use_dropout:
        # Host-side dropout bits (uint32); keep decision = one compare in-kernel.
        bits = jax.random.bits(jax.random.PRNGKey(seed), (M, H), dtype=jnp.uint32)
        in_specs.append(pl.BlockSpec((tm, th), lambda i, h: (i, h)))
        args.append(bits)

    bytes_accessed = (sum(int(a.size) * a.dtype.itemsize for a in args)
                      + M * E * x.dtype.itemsize)
    cost = pl.CostEstimate(flops=4 * M * E * H, transcendentals=0,
                           bytes_accessed=bytes_accessed)

    kern = functools.partial(_ffn_kernel, training=training,
                             keep_prob=keep_prob, use_bf16_matmul=use_bf16_matmul)

    out = pl.pallas_call(
        kern,
        out_shape=jax.ShapeDtypeStruct((M, E), x.dtype),
        grid_spec=pltpu.PrefetchScalarGridSpec(
            num_scalar_prefetch=0,
            grid=grid,
            in_specs=in_specs,
            out_specs=pl.BlockSpec((tm, E), lambda i, h: (i, 0)),
            scratch_shapes=[pltpu.VMEM((tm, E), jnp.float32)],   # ff2 accumulator
        ),
        compiler_params=pltpu.CompilerParams(
            dimension_semantics=("parallel", "arbitrary"),
            vmem_limit_bytes=vmem_limit_bytes),
        cost_estimate=cost,
    )(*args)

    return out.reshape(B, S, E)


def _init_linear(key, out_features, in_features, dtype=jnp.float32):
    # Deterministic init mimicking torch.nn.Linear (uniform ±1/sqrt(fan_in)).
    k_w, k_b = jax.random.split(key)
    bound = 1.0 / (in_features ** 0.5)
    w = jax.random.uniform(k_w, (out_features, in_features), dtype,
                           minval=-bound, maxval=bound)
    b = jax.random.uniform(k_b, (out_features,), dtype,
                           minval=-bound, maxval=bound)
    return w, b


if __name__ == "__main__":
    key = jax.random.PRNGKey(0)
    k_x, k_ff1, k_ff2 = jax.random.split(key, 3)

    # Small but lane-dense shapes (E, H multiples of 128).
    batch, seq, emd_dim, hidden_size = 2, 8, 128, 256

    x = jax.random.normal(k_x, (batch, seq, emd_dim), dtype=jnp.float32)
    w1, b1 = _init_linear(k_ff1, hidden_size, emd_dim)   # ff1: emd_dim -> hidden
    w2, b2 = _init_linear(k_ff2, emd_dim, hidden_size)   # ff2: hidden -> emd_dim

    # Pre-transpose ONCE at parameter-creation time.
    w1_t = jnp.asarray(w1.T)   # (E, H)
    w2_t = jnp.asarray(w2.T)   # (H, E)

    mm = functools.partial(jnp.matmul, precision=jax.lax.Precision.HIGHEST)
    ref = mm(jnp.maximum(mm(x, w1.T) + b1, 0.0), w2.T) + b2

    # 1) Eval mode (dropout = identity), single H-chunk.
    y = jax.block_until_ready(feed_forward(x, w1_t, b1, w2_t, b2, training=False))
    assert jnp.allclose(y, ref, atol=2e-4, rtol=2e-4), "eval mismatch vs reference"

    # 2) Eval mode with forced H-chunking (2 chunks) — exercises the accumulator path.
    y_c = jax.block_until_ready(feed_forward(x, w1_t, b1, w2_t, b2,
                                             training=False, th=128))
    assert jnp.allclose(y_c, ref, atol=2e-4, rtol=2e-4), "chunked eval mismatch"

    # 3) bf16 activations/weights: native-dtype MXU path, f32 accumulation.
    yb = jax.block_until_ready(feed_forward(
        x.astype(jnp.bfloat16), w1_t.astype(jnp.bfloat16), b1.astype(jnp.bfloat16),
        w2_t.astype(jnp.bfloat16), b2.astype(jnp.bfloat16), training=False))
    assert yb.dtype == jnp.bfloat16
    assert jnp.allclose(yb.astype(jnp.float32), ref, atol=5e-2, rtol=5e-2), \
        "bf16 path mismatch vs reference"

    # 4) Training mode (p=0.1): exact check against a reference built with the
    #    SAME host-side dropout bits (same PRNGKey + threshold as the wrapper).
    p, seed = 0.1, 123
    keep_prob = 1.0 - p
    M = batch * seq
    bits = jax.random.bits(jax.random.PRNGKey(seed), (M, hidden_size),
                           dtype=jnp.uint32)
    thresh = jnp.uint32(min(int(round(keep_prob * 4294967296.0)), 4294967295))
    keep = (bits < thresh).reshape(batch, seq, hidden_size)
    h_ref = jnp.maximum(mm(x, w1.T) + b1, 0.0)
    ref_train = mm(jnp.where(keep, h_ref, 0.0), w2.T) * (1.0 / keep_prob) + b2

    yt = jax.block_until_ready(feed_forward(x, w1_t, b1, w2_t, b2,
                                            p=p, training=True, seed=seed))
    assert yt.shape == y.shape
    assert bool(jnp.all(jnp.isfinite(yt)))
    assert jnp.allclose(yt, ref_train, atol=2e-4, rtol=2e-4), \
        "training dropout mismatch vs reference"
    assert not jnp.allclose(yt, y), "training dropout should perturb the output"

    print("KERNEL_OK")
</pallas_src>

<mosaic_0001>
module attributes {stable_mosaic.version = 11 : i64} {
  func.func @_ffn_kernel(%arg0: i32, %arg1: i32, %arg2: memref<8x128xf32, #tpu.memory_space<vmem>>, %arg3: memref<128x256xf32, #tpu.memory_space<vmem>>, %arg4: memref<1x256xf32, #tpu.memory_space<vmem>>, %arg5: memref<256x128xf32, #tpu.memory_space<vmem>>, %arg6: memref<1x128xf32, #tpu.memory_space<vmem>>, %arg7: memref<8x128xf32, #tpu.memory_space<vmem>>, %arg8: memref<8x128xf32, #tpu.memory_space<vmem>>) attributes {dimension_semantics = [#tpu.dimension_semantics<parallel>, #tpu.dimension_semantics<arbitrary>], iteration_bounds = array<i64: 2, 1>, scalar_prefetch = 0 : i64, scratch_operands = 1 : i64, tpu.core_type = #tpu.core_type<tc>, window_params = [{transform_indices = @transform_0, window_bounds = array<i64: 8, 128>}, {transform_indices = @transform_1, window_bounds = array<i64: 128, 256>}, {transform_indices = @transform_2, window_bounds = array<i64: 1, 256>}, {transform_indices = @transform_3, window_bounds = array<i64: 256, 128>}, {pipeline_mode = #tpu.pipeline_mode<synchronous>, transform_indices = @transform_4, window_bounds = array<i64: 1, 128>}, {transform_indices = @transform_5, window_bounds = array<i64: 8, 128>}]} {
    %c0_i32 = arith.constant 0 : i32
    %0 = arith.cmpi eq, %arg1, %c0_i32 : i32
    %1 = arith.extui %0 : i1 to i32
    %c0_i32_0 = arith.constant 0 : i32
    %2 = arith.cmpi ne, %1, %c0_i32_0 : i32
    scf.if %2 {
      %cst_16 = arith.constant 0.000000e+00 : f32
      %19 = vector.broadcast %cst_16 : f32 to vector<8x128xf32>
      %c0_17 = arith.constant 0 : index
      %c0_18 = arith.constant 0 : index
      %20 = vector.load %arg8[%c0_17, %c0_18] : memref<8x128xf32, #tpu.memory_space<vmem>>, vector<8x128xf32>
      tpu.vector_store %arg8[%c0_17, %c0_18], %19 {strides = array<i32>} : memref<8x128xf32, #tpu.memory_space<vmem>>, vector<8x128xf32>,
    } else {
    }
    %c0 = arith.constant 0 : index
    %c0_1 = arith.constant 0 : index
    %3 = vector.load %arg2[%c0, %c0_1] : memref<8x128xf32, #tpu.memory_space<vmem>>, vector<8x128xf32>
    %c0_2 = arith.constant 0 : index
    %c0_3 = arith.constant 0 : index
    %4 = vector.load %arg3[%c0_2, %c0_3] : memref<128x256xf32, #tpu.memory_space<vmem>>, vector<128x256xf32>
    %c0_4 = arith.constant 0 : index
    %c0_5 = arith.constant 0 : index
    %5 = vector.load %arg5[%c0_4, %c0_5] : memref<256x128xf32, #tpu.memory_space<vmem>>, vector<256x128xf32>
    %cst = arith.constant dense<0.000000e+00> : vector<8x256xf32>
    %6 = tpu.matmul %3, %4, %cst {dimension_numbers = #tpu.dot_dimension_numbers<[1], [0], [0], [1], [0, 0, 1, 1], [], []>, precision = #tpu.contract_precision<fp32>} : vector<8x128xf32>, vector<128x256xf32>, vector<8x256xf32> -> vector<8x256xf32>
    %c0_6 = arith.constant 0 : index
    %c0_7 = arith.constant 0 : index
    %7 = vector.load %arg4[%c0_6, %c0_7] : memref<1x256xf32, #tpu.memory_space<vmem>>, vector<1x256xf32>
    %8 = vector.broadcast %7 : vector<1x256xf32> to vector<8x256xf32>
    %9 = arith.addf %6, %8 : vector<8x256xf32>
    %cst_8 = arith.constant 0.000000e+00 : f32
    %10 = vector.broadcast %cst_8 : f32 to vector<8x256xf32>
    %11 = arith.maximumf %9, %10 : vector<8x256xf32>
    %c0_9 = arith.constant 0 : index
    %c0_10 = arith.constant 0 : index
    %12 = vector.load %arg8[%c0_9, %c0_10] : memref<8x128xf32, #tpu.memory_space<vmem>>, vector<8x128xf32>
    %cst_11 = arith.constant dense<0.000000e+00> : vector<8x128xf32>
    %13 = tpu.matmul %11, %5, %cst_11 {dimension_numbers = #tpu.dot_dimension_numbers<[1], [0], [0], [1], [0, 0, 1, 1], [], []>, precision = #tpu.contract_precision<fp32>} : vector<8x256xf32>, vector<256x128xf32>, vector<8x128xf32> -> vector<8x128xf32>
    %14 = arith.addf %12, %13 : vector<8x128xf32>
    %c0_12 = arith.constant 0 : index
    %c0_13 = arith.constant 0 : index
    %15 = vector.load %arg8[%c0_12, %c0_13] : memref<8x128xf32, #tpu.memory_space<vmem>>, vector<8x128xf32>
    tpu.vector_store %arg8[%c0_12, %c0_13], %14 {strides = array<i32>} : memref<8x128xf32, #tpu.memory_space<vmem>>, vector<8x128xf32>,
    %c0_i32_14 = arith.constant 0 : i32
    %16 = arith.cmpi eq, %arg1, %c0_i32_14 : i32
    %17 = arith.extui %16 : i1 to i32
    %c0_i32_15 = arith.constant 0 : i32
    %18 = arith.cmpi ne, %17, %c0_i32_15 : i32
    scf.if %18 {
      %c0_16 = arith.constant 0 : index
      %c0_17 = arith.constant 0 : index
      %19 = vector.load %arg8[%c0_16, %c0_17] : memref<8x128xf32, #tpu.memory_space<vmem>>, vector<8x128xf32>
      %c0_18 = arith.constant 0 : index
      %c0_19 = arith.constant 0 : index
      %20 = vector.load %arg6[%c0_18, %c0_19] : memref<1x128xf32, #tpu.memory_space<vmem>>, vector<1x128xf32>
      %21 = vector.broadcast %20 : vector<1x128xf32> to vector<8x128xf32>
      %22 = arith.addf %19, %21 : vector<8x128xf32>
      %c0_20 = arith.constant 0 : index
      %c0_21 = arith.constant 0 : index
      %23 = vector.load %arg7[%c0_20, %c0_21] : memref<8x128xf32, #tpu.memory_space<vmem>>, vector<8x128xf32>
      tpu.vector_store %arg7[%c0_20, %c0_21], %22 {strides = array<i32>} : memref<8x128xf32, #tpu.memory_space<vmem>>, vector<8x128xf32>,
    } else {
    }
    return
  }
  func.func @transform_0(%arg0: i32, %arg1: i32) -> (i32, i32) {
    %c0_i32 = arith.constant 0 : i32
    %c0_i32_0 = arith.constant 0 : i32
    return %arg0, %c0_i32 : i32, i32
  }
  func.func @transform_1(%arg0: i32, %arg1: i32) -> (i32, i32) {
    %c0_i32 = arith.constant 0 : i32
    %c0_i32_0 = arith.constant 0 : i32
    return %c0_i32, %arg1 : i32, i32
  }
  func.func @transform_2(%arg0: i32, %arg1: i32) -> (i32, i32) {
    %c0_i32 = arith.constant 0 : i32
    %c0_i32_0 = arith.constant 0 : i32
    return %c0_i32, %arg1 : i32, i32
  }
  func.func @transform_3(%arg0: i32, %arg1: i32) -> (i32, i32) {
    %c0_i32 = arith.constant 0 : i32
    %c0_i32_0 = arith.constant 0 : i32
    return %arg1, %c0_i32 : i32, i32
  }
  func.func @transform_4(%arg0: i32, %arg1: i32) -> (i32, i32) {
    %c0_i32 = arith.constant 0 : i32
    %c0_i32_0 = arith.constant 0 : i32
    %c0_i32_1 = arith.constant 0 : i32
    return %c0_i32, %c0_i32_0 : i32, i32
  }
  func.func @transform_5(%arg0: i32, %arg1: i32) -> (i32, i32) {
    %c0_i32 = arith.constant 0 : i32
    %c0_i32_0 = arith.constant 0 : i32
    return %arg0, %c0_i32 : i32, i32
  }
}

</mosaic_0001>

<llo_original>
// kernel: tpu_custom_call.1
$region0: #{tpu_custom_call.1}
  #allocation0 [shape = 'u32[]', space=smem, size = 0x4, offset = 0x4, fixed_abs, tag = 'smem constant byte address 0x4 - core index']
  #allocation1 [shape = 'u32[144,128]{1,0:T(1,128)}', space=vmem, size = 0x12000, scoped, tag = 'internal scratch']
  #allocation2 [shape = 'f32[8,128]{1,0:T(8,128)}', space=vmem, size = 0x1000, scoped, tag = 'scratch operand']
  %s0 = inlined_call_operand.hbm [shape: f32[16,128], index: 0, kind: input, shape index: {}]
  %s1 = inlined_call_operand.hbm [shape: f32[128,256], index: 1, kind: input, shape index: {}]
  %s2 = inlined_call_operand.vmem [shape: f32[1,256], index: 2, kind: input, shape index: {}]
  %s3 = inlined_call_operand.hbm [shape: f32[256,128], index: 3, kind: input, shape index: {}]
  %s4 = inlined_call_operand.vmem [shape: f32[1,128], index: 4, kind: input, shape index: {}]
  %s5 = inlined_call_operand.hbm [shape: f32[16,128], index: 5, kind: output, shape index: {}]
  %s6 = sld [smem:[#allocation0]]
  $region73: #{tpu_custom_call.1} parent=0
    _
  %s8 = ssub.s32 1, %s6
  %s9 = scalar_select 0, %s8, %s6
  $region1: #{tpu_custom_call.1} parent=0
    #allocation3 [shape = 'u8[8192]{0}', space=vmem, size = 0x2000, scoped, tag = 'input window, operand 0']
    #allocation4 [shape = 's32[2]{0}', space=sflag, size = 0x8, scoped, tag = 'scoped memory for tpu_custom_call.1']
    #allocation5 [shape = 's32[2]{0}', space=sflag, size = 0x8, scoped, tag = 'scoped memory for tpu_custom_call.1']
    #allocation6 [shape = 'u8[131072]{0}', space=vmem, size = 0x20000, scoped, tag = 'input window, operand 1, single buffered']
    #allocation7 [shape = 's32[1]{0}', space=sflag, size = 0x4, scoped, tag = 'scoped memory for tpu_custom_call.1']
    #allocation8 [shape = 'u8[131072]{0}', space=vmem, size = 0x20000, scoped, tag = 'input window, operand 3, single buffered']
    #allocation9 [shape = 'u8[8192]{0}', space=vmem, size = 0x2000, scoped, tag = 'output window, operand 0']
    %10 = vsyncpa [#allocation4], 0
    %s11 = scalar_lea.sflag [#allocation4], 1
    %12 = vsyncpa %s11, 0
    %13 = vsyncpa [#allocation7], 0
    %14 = vsyncpa [#allocation5], 0
    %s15 = scalar_lea.sflag [#allocation5], 1
    %16 = vsyncpa %s15, 0
    loop: start=0, step=1, limit=4
    $region2: #{tpu_custom_call.1} parent=1 // loop_pre_header
      _
    $region3: #{tpu_custom_call.1} parent=1 // loop_header
      %s18 = sphi 0, %s22
      %p19 = scmp.ge.s32.totalorder %s18, 4
      %s25 = sphi 0, %s37
      %s26 = sphi 0, %s33
      %s27 = sphi 0, %s25
      %s28 = sphi 0, %s26
      %s29 = sphi 0, %s27
      %s30 = sphi 0, %s28
      %s40 = sphi 0, %s42
      %s43 = sphi 0, %s40
      %s44 = sphi 0, %s43
      %s60 = sphi 0, %s44
      %s66 = sphi 0, %s68
      %s69 = sphi 0, %s66
      %s70 = sphi 0, %s69
      %s86 = sphi 0, %s70
      %s92 = sphi 0, %s94
      %s95 = sphi 0, %s92
      %s96 = sphi 0, %s95
      %s112 = sphi 0, %s96
      %s118 = sphi 0, %s120
      %s121 = sphi 0, %s118
      %s122 = sphi 0, %s121
      %s138 = sphi 0, %s122
      %s142 = sphi 0, %s142
      %s144 = sphi 0, %s142
      %s145 = sphi 0, %s144
      %s159 = sphi 0, %s145
      %s165 = sphi 0, %s167
      %s168 = sphi 0, %s165
      %s169 = sphi 0, %s168
      %s185 = sphi 0, %s169
    $region4: #{tpu_custom_call.1} parent=1 // loop_header_branch
      %21 = sbr.rel (%p19) target = $region8
    $region5: #{tpu_custom_call.1} parent=1 // loop_body
      %s23 = ssub.s32 %s18, 1
      %s24 = ssub.s32 %s18, 2
      %s31 = sadd.s32 1, %s26
      %p32 = scmp.ge.s32.totalorder %s31, 1
      %s33 = scalar_select %p32, 0, %s31
      %s34 = sadd.s32 1, %s25
      %s35 = scalar_select %p32, %s34, %s25
      %p36 = scmp.ge.s32.totalorder %s35, 2
      %s37 = scalar_select %p36, 0, %s35
      %s38 = ssub.s32 %s25, %s37
      %p39 = scmp.eq.s32.totalorder %s38, 0
      %s41 = sadd.s32 %s40, 1
      %s42 = scalar_select %p39, %s40, %s41
      %p45 = pneg %p39
      %p46 = scmp.eq.s32.totalorder %s18, 1
      %p47 = por %p45, %p46
      %p48 = scmp.ne.s32.totalorder %s40, %s43
      %p49 = scmp.eq.s32.totalorder %s18, 0
      %p50 = por %p48, %p49
      %p51 = scmp.ne.s32.totalorder %s40, %s43
      %p52 = scmp.eq.s32.totalorder %s23, 1
      %p53 = por %p51, %p52
      %p54 = scmp.ne.s32.totalorder %s43, %s44
      %p55 = scmp.eq.s32.totalorder %s23, 0
      %p56 = por %p54, %p55
      %p57 = scmp.ne.s32.totalorder %s43, %s44
      %p58 = scmp.eq.s32.totalorder %s24, 1
      %p59 = por %p57, %p58
      %p61 = scmp.ne.s32.totalorder %s44, %s60
      %p62 = scmp.eq.s32.totalorder %s24, 0
      %p63 = por %p61, %p62
      %s64 = ssub.s32 %s26, %s33
      %p65 = scmp.eq.s32.totalorder %s64, 0
      %s67 = sadd.s32 %s66, 1
      %s68 = scalar_select %p65, %s66, %s67
      %p71 = pneg %p65
      %p72 = scmp.eq.s32.totalorder %s18, 1
      %p73 = por %p71, %p72
      %p74 = scmp.ne.s32.totalorder %s66, %s69
      %p75 = scmp.eq.s32.totalorder %s18, 0
      %p76 = por %p74, %p75
      %p77 = scmp.ne.s32.totalorder %s66, %s69
      %p78 = scmp.eq.s32.totalorder %s23, 1
      %p79 = por %p77, %p78
      %p80 = scmp.ne.s32.totalorder %s69, %s70
      %p81 = scmp.eq.s32.totalorder %s23, 0
      %p82 = por %p80, %p81
      %p83 = scmp.ne.s32.totalorder %s69, %s70
      %p84 = scmp.eq.s32.totalorder %s24, 1
      %p85 = por %p83, %p84
      %p87 = scmp.ne.s32.totalorder %s70, %s86
      %p88 = scmp.eq.s32.totalorder %s24, 0
      %p89 = por %p87, %p88
      %s90 = ssub.s32 %s26, %s33
      %p91 = scmp.eq.s32.totalorder %s90, 0
      %s93 = sadd.s32 %s92, 1
      %s94 = scalar_select %p91, %s92, %s93
      %p97 = pneg %p91
      %p98 = scmp.eq.s32.totalorder %s18, 1
      %p99 = por %p97, %p98
      %p100 = scmp.ne.s32.totalorder %s92, %s95
      %p101 = scmp.eq.s32.totalorder %s18, 0
      %p102 = por %p100, %p101
      %p103 = scmp.ne.s32.totalorder %s92, %s95
      %p104 = scmp.eq.s32.totalorder %s23, 1
      %p105 = por %p103, %p104
      %p106 = scmp.ne.s32.totalorder %s95, %s96
      %p107 = scmp.eq.s32.totalorder %s23, 0
      %p108 = por %p106, %p107
      %p109 = scmp.ne.s32.totalorder %s95, %s96
      %p110 = scmp.eq.s32.totalorder %s24, 1
      %p111 = por %p109, %p110
      %p113 = scmp.ne.s32.totalorder %s96, %s112
      %p114 = scmp.eq.s32.totalorder %s24, 0
      %p115 = por %p113, %p114
      %s116 = ssub.s32 %s26, %s33
      %p117 = scmp.eq.s32.totalorder %s116, 0
      %s119 = sadd.s32 %s118, 1
      %s120 = scalar_select %p117, %s118, %s119
      %p123 = pneg %p117
      %p124 = scmp.eq.s32.totalorder %s18, 1
      %p125 = por %p123, %p124
      %p126 = scmp.ne.s32.totalorder %s118, %s121
      %p127 = scmp.eq.s32.totalorder %s18, 0
      %p128 = por %p126, %p127
      %p129 = scmp.ne.s32.totalorder %s118, %s121
      %p130 = scmp.eq.s32.totalorder %s23, 1
      %p131 = por %p129, %p130
      %p132 = scmp.ne.s32.totalorder %s121, %s122
      %p133 = scmp.eq.s32.totalorder %s23, 0
      %p134 = por %p132, %p133
      %p135 = scmp.ne.s32.totalorder %s121, %s122
      %p136 = scmp.eq.s32.totalorder %s24, 1
      %p137 = por %p135, %p136
      %p139 = scmp.ne.s32.totalorder %s122, %s138
      %p140 = scmp.eq.s32.totalorder %s24, 0
      %p141 = por %p139, %p140
      %s143 = sadd.s32 %s142, 1
      %p146 = scmp.eq.s32.totalorder %s18, 1
      %p147 = scmp.ne.s32.totalorder %s142, %s144
      %p148 = scmp.eq.s32.totalorder %s18, 0
      %p149 = por %p147, %p148
      %p150 = scmp.ne.s32.totalorder %s142, %s144
      %p151 = scmp.eq.s32.totalorder %s23, 1
      %p152 = por %p150, %p151
      %p153 = scmp.ne.s32.totalorder %s144, %s145
      %p154 = scmp.eq.s32.totalorder %s23, 0
      %p155 = por %p153, %p154
      %p156 = scmp.ne.s32.totalorder %s144, %s145
      %p157 = scmp.eq.s32.totalorder %s24, 1
      %p158 = por %p156, %p157
      %p160 = scmp.ne.s32.totalorder %s145, %s159
      %p161 = scmp.eq.s32.totalorder %s24, 0
      %p162 = por %p160, %p161
      %s163 = ssub.s32 %s25, %s37
      %p164 = scmp.eq.s32.totalorder %s163, 0
      %s166 = sadd.s32 %s165, 1
      %s167 = scalar_select %p164, %s165, %s166
      %p170 = pneg %p164
      %p171 = scmp.eq.s32.totalorder %s18, 1
      %p172 = por %p170, %p171
      %p173 = scmp.ne.s32.totalorder %s165, %s168
      %p174 = scmp.eq.s32.totalorder %s18, 0
      %p175 = por %p173, %p174
      %p176 = scmp.ne.s32.totalorder %s165, %s168
      %p177 = scmp.eq.s32.totalorder %s23, 1
      %p178 = por %p176, %p177
      %p179 = scmp.ne.s32.totalorder %s168, %s169
      %p180 = scmp.eq.s32.totalorder %s23, 0
      %p181 = por %p179, %p180
      %p182 = scmp.ne.s32.totalorder %s168, %s169
      %p183 = scmp.eq.s32.totalorder %s24, 1
      %p184 = por %p182, %p183
      %p186 = scmp.ne.s32.totalorder %s169, %s185
      %p187 = scmp.eq.s32.totalorder %s24, 0
      %p188 = por %p186, %p187
      %p189 = scmp.le.s32.totalorder 1, %s18
      %p190 = scmp.lt.s32.totalorder %s18, 3
      %p191 = pnand %p189, %p190
      %p192 = pneg %p191
      // Predicated region
      $region9: #{tpu_custom_call.1} parent=5 // pred_check
        _
      $region10: #{tpu_custom_call.1} parent=5 // pred_check_branch
        %194 = sbr.rel (%p191) target = $region12
      $region11: #{tpu_custom_call.1} parent=5 // pred_region
        %s195 = ssub.s32 %s18, 1
        // Predicated region
        $region13: #{tpu_custom_call.1} parent=11 // pred_check
          %p196 = pneg %p82
        $region14: #{tpu_custom_call.1} parent=11 // pred_check_branch
          %198 = sbr.rel (%p196) target = $region16
        $region15: #{tpu_custom_call.1} parent=11 // pred_region
          %s199 = smul.u32 2, %s28
          %s201 = ssub.s32 4096, 4096
          %202 = vsyncadd [#allocation7], %s201
          %s203 = smul.addr %s199, 128
          %s204 = scalar_lea.hbm %s1, %s203
          %s205 = sshll.u32 [#allocation6], 4
          %s206 = int_to_ptr.vmem [resolvable:$true] %s205
          %211 = dma.hbm_to_vmem [thread:$0]  %s204, 4096, %s206, [#allocation7], 256, 256, 16
        $region16: #{tpu_custom_call.1} parent=11 // pred_fallthru
          _
        // Predicated region
        $region17: #{tpu_custom_call.1} parent=11 // pred_check
          %p212 = pneg %p108
        $region18: #{tpu_custom_call.1} parent=11 // pred_check_branch
          %214 = sbr.rel (%p212) target = $region20
        $region19: #{tpu_custom_call.1} parent=11 // pred_region
          %s215 = smul.u32 2, %s28
          %p216 = scmp.lt.s32.totalorder %s215, 1
          %s217 = scalar_select %p216, %s215, 1
          %s218 = scalar_lea.vmem %s2, %s217
          %s219 = smul.u32 2, %s28
        $region20: #{tpu_custom_call.1} parent=11 // pred_fallthru
          _
        // Predicated region
        $region21: #{tpu_custom_call.1} parent=11 // pred_check
          %p220 = pneg %p134
        $region22: #{tpu_custom_call.1} parent=11 // pred_check_branch
          %222 = sbr.rel (%p220) target = $region24
        $region23: #{tpu_custom_call.1} parent=11 // pred_region
          %s223 = smul.u32 32, %s28
          %s225 = ssub.s32 4096, 4096
          %226 = vsyncadd [#allocation7], %s225
          %s227 = smul.addr %s223, 128
          %s228 = scalar_lea.hbm %s3, %s227
          %s229 = sshll.u32 [#allocation8], 4
          %s230 = int_to_ptr.vmem [resolvable:$true] %s229
          %235 = dma.hbm_to_vmem [thread:$0]  %s228, 4096, %s230, [#allocation7], 128, 128, 8
        $region24: #{tpu_custom_call.1} parent=11 // pred_fallthru
          _
        // Predicated region
        $region25: #{tpu_custom_call.1} parent=11 // pred_check
          %p236 = pneg %p155
        $region26: #{tpu_custom_call.1} parent=11 // pred_check_branch
          %238 = sbr.rel (%p236) target = $region28
        $region27: #{tpu_custom_call.1} parent=11 // pred_region
          _
        $region28: #{tpu_custom_call.1} parent=11 // pred_fallthru
          _
      $region12: #{tpu_custom_call.1} parent=5 // pred_fallthru
        _
      %p239 = scmp.lt.s32.totalorder %s18, 2
      // Predicated region
      $region29: #{tpu_custom_call.1} parent=5 // pred_check
        %p240 = pneg %p239
      $region30: #{tpu_custom_call.1} parent=5 // pred_check_branch
        %242 = sbr.rel (%p240) target = $region32
      $region31: #{tpu_custom_call.1} parent=5 // pred_region
        // Predicated region
        $region33: #{tpu_custom_call.1} parent=31 // pred_check
          %p243 = pneg %p50
        $region34: #{tpu_custom_call.1} parent=31 // pred_check_branch
          %245 = sbr.rel (%p243) target = $region36
        $region35: #{tpu_custom_call.1} parent=31 // pred_region
          %s246 = sand.u32 %s40, 1
          %s247 = scalar_lea.sflag [#allocation4], %s246
          %s248 = sand.u32 %s40, 1
          %s249 = smul.addr %s248, 8
          %s250 = scalar_lea.vmem [#allocation3], %s249
          %s252 = ssub.s32 128, 128
          %253 = vsyncadd %s247, %s252
          %s254 = smul.addr %s25, 128
          %s255 = scalar_lea.hbm %s0, %s254
          %s257 = sshll.u32 %s250, 4
          %s258 = int_to_ptr.vmem [resolvable:$true] %s257
          %260 = dma.hbm_to_vmem [thread:$0]  %s255, 128, %s258, %s247
        $region36: #{tpu_custom_call.1} parent=31 // pred_fallthru
          _
      $region32: #{tpu_custom_call.1} parent=5 // pred_fallthru
        _
      %p261 = scmp.le.s32.totalorder 1, %s18
      %p262 = scmp.lt.s32.totalorder %s18, 3
      %p263 = pnand %p261, %p262
      %p264 = pneg %p263
      // Predicated region
      $region37: #{tpu_custom_call.1} parent=5 // pred_check
        _
      $region38: #{tpu_custom_call.1} parent=5 // pred_check_branch
        %266 = sbr.rel (%p263) target = $region40
      $region39: #{tpu_custom_call.1} parent=5 // pred_region
        %s267 = ssub.s32 %s18, 1
        %s268 = sand.u32 %s43, 1
        %s269 = scalar_lea.sflag [#allocation4], %s268
        %s270 = sand.u32 %s43, 1
        %s271 = smul.addr %s270, 8
        %s272 = scalar_lea.vmem [#allocation3], %s271
        // Predicated region
        $region41: #{tpu_custom_call.1} parent=39 // pred_check
          %p273 = pneg %p56
        $region42: #{tpu_custom_call.1} parent=39 // pred_check_branch
          %275 = sbr.rel (%p273) target = $region44
        $region43: #{tpu_custom_call.1} parent=39 // pred_region
          %276 = dma.done %s269, 128
        $region44: #{tpu_custom_call.1} parent=39 // pred_fallthru
          _
        // Predicated region
        $region45: #{tpu_custom_call.1} parent=39 // pred_check
          %p277 = pneg %p82
        $region46: #{tpu_custom_call.1} parent=39 // pred_check_branch
          %279 = sbr.rel (%p277) target = $region48
        $region47: #{tpu_custom_call.1} parent=39 // pred_region
          %280 = dma.done [#allocation7], 4096
        $region48: #{tpu_custom_call.1} parent=39 // pred_fallthru
          _
        // Predicated region
        $region49: #{tpu_custom_call.1} parent=39 // pred_check
          %p281 = pneg %p134
        $region50: #{tpu_custom_call.1} parent=39 // pred_check_branch
          %283 = sbr.rel (%p281) target = $region52
        $region51: #{tpu_custom_call.1} parent=39 // pred_region
          %284 = dma.done [#allocation7], 4096
        $region52: #{tpu_custom_call.1} parent=39 // pred_fallthru
          _
        %s285 = sand.u32 %s43, 1
        %s286 = scalar_lea.sflag [#allocation4], %s285
        %s287 = sand.u32 %s43, 1
        %s288 = smul.addr %s287, 8
        %s289 = scalar_lea.vmem [#allocation3], %s288
        %p290 = pneg %p56
        %p291 = pneg %p53
        %p292 = pneg %p82
        %p293 = pneg %p79
        %s294 = smul.u32 2, %s28
        %p295 = scmp.lt.s32.totalorder %s294, 1
        %s296 = scalar_select %p295, %s294, 1
        %s297 = scalar_lea.vmem %s2, %s296
        %p298 = pneg %p108
        %p299 = pneg %p105
        %p300 = pneg %p134
        %p301 = pneg %p131
        %p302 = pneg %p155
        %p303 = pneg %p152
        %p304 = pneg %p181
        %p305 = pneg %p178
        %s306 = sand.u32 %s168, 1
        %s307 = scalar_lea.sflag [#allocation5], %s306
        %s308 = sand.u32 %s168, 1
        %s309 = smul.addr %s308, 8
        %s310 = scalar_lea.vmem [#allocation9], %s309
        %s311 = smul.u32 2, %s28
        %s312 = smul.u32 2, %s28
        %p313 = scmp.lt.s32.totalorder %s312, 1
        %s314 = scalar_select %p313, %s312, 1
        %s315 = scalar_lea.vmem %s2, %s314
        %s316 = smul.u32 2, %s28
        %s317 = smul.u32 32, %s28
        %p318 = scmp.eq.s32.totalorder %s28, 0
        // Predicated region
        $region53: #{tpu_custom_call.1} parent=39 // pred_check
          %p319 = pneg %p318
        $region54: #{tpu_custom_call.1} parent=39 // pred_check_branch
          %321 = sbr.rel (%p319) target = $region56
        $region55: #{tpu_custom_call.1} parent=39 // pred_region
          %322 = vst [vmem:[#allocation2] sm:$0xff] 0.0
        $region56: #{tpu_custom_call.1} parent=39 // pred_fallthru
          _
        %v323 = vld [vmem:[%s272] sm:$0xff]
        %v324 = vld [vmem:[#allocation6] sm:$0xff]
        %v325 = vld [vmem:[#allocation6 + $0x8] sm:$0xff]
        %v326 = vld [vmem:[#allocation6 + $0x10] sm:$0xff]
        %v327 = vld [vmem:[#allocation6 + $0x18] sm:$0xff]
        %v328 = vld [vmem:[#allocation6 + $0x20] sm:$0xff]
        %v329 = vld [vmem:[#allocation6 + $0x28] sm:$0xff]
        %v330 = vld [vmem:[#allocation6 + $0x30] sm:$0xff]
        %v331 = vld [vmem:[#allocation6 + $0x38] sm:$0xff]
        %v332 = vld [vmem:[#allocation6 + $0x40] sm:$0xff]
        %v333 = vld [vmem:[#allocation6 + $0x48] sm:$0xff]
        %v334 = vld [vmem:[#allocation6 + $0x50] sm:$0xff]
        %v335 = vld [vmem:[#allocation6 + $0x58] sm:$0xff]
        %v336 = vld [vmem:[#allocation6 + $0x60] sm:$0xff]
        %v337 = vld [vmem:[#allocation6 + $0x68] sm:$0xff]
        %v338 = vld [vmem:[#allocation6 + $0x70] sm:$0xff]
        %v339 = vld [vmem:[#allocation6 + $0x78] sm:$0xff]
        %v340 = vld [vmem:[#allocation6 + $0x80] sm:$0xff]
        %v341 = vld [vmem:[#allocation6 + $0x88] sm:$0xff]
        %v342 = vld [vmem:[#allocation6 + $0x90] sm:$0xff]
        %v343 = vld [vmem:[#allocation6 + $0x98] sm:$0xff]
        %v344 = vld [vmem:[#allocation6 + $0xa0] sm:$0xff]
        %v345 = vld [vmem:[#allocation6 + $0xa8] sm:$0xff]
        %v346 = vld [vmem:[#allocation6 + $0xb0] sm:$0xff]
        %v347 = vld [vmem:[#allocation6 + $0xb8] sm:$0xff]
        %v348 = vld [vmem:[#allocation6 + $0xc0] sm:$0xff]
        %v349 = vld [vmem:[#allocation6 + $0xc8] sm:$0xff]
        %v350 = vld [vmem:[#allocation6 + $0xd0] sm:$0xff]
        %v351 = vld [vmem:[#allocation6 + $0xd8] sm:$0xff]
        %v352 = vld [vmem:[#allocation6 + $0xe0] sm:$0xff]
        %v353 = vld [vmem:[#allocation6 + $0xe8] sm:$0xff]
        %v354 = vld [vmem:[#allocation6 + $0xf0] sm:$0xff]
        %v355 = vld [vmem:[#allocation6 + $0xf8] sm:$0xff]
        %v356 = vld [vmem:[#allocation8] sm:$0xff]
        %v357 = vld [vmem:[#allocation8 + $0x8] sm:$0xff]
        %v358 = vld [vmem:[#allocation8 + $0x10] sm:$0xff]
        %v359 = vld [vmem:[#allocation8 + $0x18] sm:$0xff]
        %v360 = vld [vmem:[#allocation8 + $0x20] sm:$0xff]
        %v361 = vld [vmem:[#allocation8 + $0x28] sm:$0xff]
        %v362 = vld [vmem:[#allocation8 + $0x30] sm:$0xff]
        %v363 = vld [vmem:[#allocation8 + $0x38] sm:$0xff]
        %v364 = vld [vmem:[#allocation8 + $0x40] sm:$0xff]
        %v365 = vld [vmem:[#allocation8 + $0x48] sm:$0xff]
        %v366 = vld [vmem:[#allocation8 + $0x50] sm:$0xff]
        %v367 = vld [vmem:[#allocation8 + $0x58] sm:$0xff]
        %v368 = vld [vmem:[#allocation8 + $0x60] sm:$0xff]
        %v369 = vld [vmem:[#allocation8 + $0x68] sm:$0xff]
        %v370 = vld [vmem:[#allocation8 + $0x70] sm:$0xff]
        %v371 = vld [vmem:[#allocation8 + $0x78] sm:$0xff]
        %v372 = vld [vmem:[#allocation8 + $0x80] sm:$0xff]
        %v373 = vld [vmem:[#allocation8 + $0x88] sm:$0xff]
        %v374 = vld [vmem:[#allocation8 + $0x90] sm:$0xff]
        %v375 = vld [vmem:[#allocation8 + $0x98] sm:$0xff]
        %v376 = vld [vmem:[#allocation8 + $0xa0] sm:$0xff]
        %v377 = vld [vmem:[#allocation8 + $0xa8] sm:$0xff]
        %v378 = vld [vmem:[#allocation8 + $0xb0] sm:$0xff]
        %v379 = vld [vmem:[#allocation8 + $0xb8] sm:$0xff]
        %v380 = vld [vmem:[#allocation8 + $0xc0] sm:$0xff]
        %v381 = vld [vmem:[#allocation8 + $0xc8] sm:$0xff]
        %v382 = vld [vmem:[#allocation8 + $0xd0] sm:$0xff]
        %v383 = vld [vmem:[#allocation8 + $0xd8] sm:$0xff]
        %v384 = vld [vmem:[#allocation8 + $0xe0] sm:$0xff]
        %v385 = vld [vmem:[#allocation8 + $0xe8] sm:$0xff]
        %v386 = vld [vmem:[#allocation8 + $0xf0] sm:$0xff]
        %v387 = vld [vmem:[#allocation8 + $0xf8] sm:$0xff]
        %v388 = vld [vmem:[%s315] sm:$0x3]
        %v390 = vlaneseq
        %v391 = vshrl.u32 %v390, 7
        %v392 = vsub.s32 0, %v391
        %v393 = vrot.slane %v388, %v392
        %v394 = vlaneseq
        %v395 = vshrl.u32 %v394, 7
        %v396 = vsub.s32 1, %v395
        %v397 = vrot.slane %v388, %v396
        %v400 = vand.u32 %v355, 4294901760
        %401 = vmatprep.subr.mxu0 %v400
        %v402 = vand.u32 %v354, 4294901760
        %403 = vmatpush1.msra.mxu0 %v402
        %v404 = vand.u32 %v353, 4294901760
        %405 = vmatprep.subr.mxu0 %v404
        %v406 = vand.u32 %v352, 4294901760
        %407 = vmatpush1.msra.mxu0 %v406
        %v408 = vand.u32 %v351, 4294901760
        %409 = vmatprep.subr.mxu0 %v408
        %v410 = vand.u32 %v350, 4294901760
        %411 = vmatpush1.msra.mxu0 %v410
        %v412 = vand.u32 %v349, 4294901760
        %413 = vmatprep.subr.mxu0 %v412
        %v414 = vand.u32 %v348, 4294901760
        %415 = vmatpush1.msra.mxu0 %v414
        %v416 = vand.u32 %v347, 4294901760
        %417 = vmatprep.subr.mxu0 %v416
        %v418 = vand.u32 %v346, 4294901760
        %419 = vmatpush1.msra.mxu0 %v418
        %v420 = vand.u32 %v345, 4294901760
        %421 = vmatprep.subr.mxu0 %v420
        %v422 = vand.u32 %v344, 4294901760
        %423 = vmatpush1.msra.mxu0 %v422
        %v424 = vand.u32 %v343, 4294901760
        %425 = vmatprep.subr.mxu0 %v424
        %v426 = vand.u32 %v342, 4294901760
        %427 = vmatpush1.msra.mxu0 %v426
        %v428 = vand.u32 %v341, 4294901760
        %429 = vmatprep.subr.mxu0 %v428
        %v430 = vand.u32 %v340, 4294901760
        %431 = vmatpush1.msra.mxu0 %v430
        %v432 = vand.u32 %v339, 4294901760
        %433 = vmatprep.subr.mxu0 %v432
        %v434 = vand.u32 %v338, 4294901760
        %435 = vmatpush1.msra.mxu0 %v434
        %v436 = vand.u32 %v337, 4294901760
        %437 = vmatprep.subr.mxu0 %v436
        %v438 = vand.u32 %v336, 4294901760
        %439 = vmatpush1.msra.mxu0 %v438
        %v440 = vand.u32 %v335, 4294901760
        %441 = vmatprep.subr.mxu0 %v440
        %v442 = vand.u32 %v334, 4294901760
        %443 = vmatpush1.msra.mxu0 %v442
        %v444 = vand.u32 %v333, 4294901760
        %445 = vmatprep.subr.mxu0 %v444
        %v446 = vand.u32 %v332, 4294901760
        %447 = vmatpush1.msra.mxu0 %v446
        %v448 = vand.u32 %v331, 4294901760
        %449 = vmatprep.subr.mxu0 %v448
        %v450 = vand.u32 %v330, 4294901760
        %451 = vmatpush1.msra.mxu0 %v450
        %v452 = vand.u32 %v329, 4294901760
        %453 = vmatprep.subr.mxu0 %v452
        %v454 = vand.u32 %v328, 4294901760
        %455 = vmatpush1.msra.mxu0 %v454
        %v456 = vand.u32 %v327, 4294901760
        %457 = vmatprep.subr.mxu0 %v456
        %v458 = vand.u32 %v326, 4294901760
        %459 = vmatpush1.msra.mxu0 %v458
        %v460 = vand.u32 %v325, 4294901760
        %461 = vmatprep.subr.mxu0 %v460
        %v462 = vand.u32 %v324, 4294901760
        %463 = vmatpush1.msra.mxu0 %v462
        %464 = vmatprep.subr.mxu0 0.0
        %465 = vmatpush2.msra.mxu0 0.0
        %466 = vmatprep.subr.mxu0 0.0
        %467 = vmatpush2.msra.mxu0 0.0
        %468 = vmatprep.subr.mxu0 0.0
        %469 = vmatpush2.msra.mxu0 0.0
        %470 = vmatprep.subr.mxu0 0.0
        %471 = vmatpush2.msra.mxu0 0.0
        %472 = vmatprep.subr.mxu0 0.0
        %473 = vmatpush2.msra.mxu0 0.0
        %474 = vmatprep.subr.mxu0 0.0
        %475 = vmatpush2.msra.mxu0 0.0
        %476 = vmatprep.subr.mxu0 0.0
        %477 = vmatpush2.msra.mxu0 0.0
        %478 = vmatprep.subr.mxu0 0.0
        %479 = vmatpush2.msra.mxu0 0.0
        %480 = vmatprep.subr.mxu0 0.0
        %481 = vmatpush2.msra.mxu0 0.0
        %482 = vmatprep.subr.mxu0 0.0
        %483 = vmatpush2.msra.mxu0 0.0
        %484 = vmatprep.subr.mxu0 0.0
        %485 = vmatpush2.msra.mxu0 0.0
        %486 = vmatprep.subr.mxu0 0.0
        %487 = vmatpush2.msra.mxu0 0.0
        %488 = vmatprep.subr.mxu0 0.0
        %489 = vmatpush2.msra.mxu0 0.0
        %490 = vmatprep.subr.mxu0 0.0
        %491 = vmatpush2.msra.mxu0 0.0
        %492 = vmatprep.subr.mxu0 0.0
        %493 = vmatpush2.msra.mxu0 0.0
        %494 = vmatprep.subr.mxu0 0.0
        %495 = vmatpush2.msra.mxu0 0.0
        %496 = vmatprep.mubr.f32.mxu0 0.0
        %v497 = vand.u32 %v323, 4294901760
        %v498 = vsub.f32 %v323, %v497
        %v499 = vand.u32 %v498, 4294901760
        %v500 = vsub.f32 %v498, %v499
        %v501 = vand.u32 %v500, 4294901760
        %502 = vmatmul.mubr.f32.gmra.mxu0 %v501
        %v503 = vpop.f32.mrf.mxu0
        %v504 = vadd.f32 %v393, %v503
        %v505 = vpop.f32.mrf.mxu0
        %v506 = vadd.f32 %v397, %v505
        %507 = vdwg.mxu0
        %v508 = vand.u32 %v355, 4294901760
        %v509 = vsub.f32 %v355, %v508
        %v510 = vand.u32 %v509, 4294901760
        %v511 = vsub.f32 %v509, %v510
        %v512 = vand.u32 %v511, 4294901760
        %513 = vmatprep.subr.mxu0 %v512
        %v514 = vand.u32 %v354, 4294901760
        %v515 = vsub.f32 %v354, %v514
        %v516 = vand.u32 %v515, 4294901760
        %v517 = vsub.f32 %v515, %v516
        %v518 = vand.u32 %v517, 4294901760
        %519 = vmatpush1.msra.mxu0 %v518
        %v520 = vand.u32 %v353, 4294901760
        %v521 = vsub.f32 %v353, %v520
        %v522 = vand.u32 %v521, 4294901760
        %v523 = vsub.f32 %v521, %v522
        %v524 = vand.u32 %v523, 4294901760
        %525 = vmatprep.subr.mxu0 %v524
        %v526 = vand.u32 %v352, 4294901760
        %v527 = vsub.f32 %v352, %v526
        %v528 = vand.u32 %v527, 4294901760
        %v529 = vsub.f32 %v527, %v528
        %v530 = vand.u32 %v529, 4294901760
        %531 = vmatpush1.msra.mxu0 %v530
        %v532 = vand.u32 %v351, 4294901760
        %v533 = vsub.f32 %v351, %v532
        %v534 = vand.u32 %v533, 4294901760
        %v535 = vsub.f32 %v533, %v534
        %v536 = vand.u32 %v535, 4294901760
        %537 = vmatprep.subr.mxu0 %v536
        %v538 = vand.u32 %v350, 4294901760
        %v539 = vsub.f32 %v350, %v538
        %v540 = vand.u32 %v539, 4294901760
        %v541 = vsub.f32 %v539, %v540
        %v542 = vand.u32 %v541, 4294901760
        %543 = vmatpush1.msra.mxu0 %v542
        %v544 = vand.u32 %v349, 4294901760
        %v545 = vsub.f32 %v349, %v544
        %v546 = vand.u32 %v545, 4294901760
        %v547 = vsub.f32 %v545, %v546
        %v548 = vand.u32 %v547, 4294901760
        %549 = vmatprep.subr.mxu0 %v548
        %v550 = vand.u32 %v348, 4294901760
        %v551 = vsub.f32 %v348, %v550
        %v552 = vand.u32 %v551, 4294901760
        %v553 = vsub.f32 %v551, %v552
        %v554 = vand.u32 %v553, 4294901760
        %555 = vmatpush1.msra.mxu0 %v554
        %v556 = vand.u32 %v347, 4294901760
        %v557 = vsub.f32 %v347, %v556
        %v558 = vand.u32 %v557, 4294901760
        %v559 = vsub.f32 %v557, %v558
        %v560 = vand.u32 %v559, 4294901760
        %561 = vmatprep.subr.mxu0 %v560
        %v562 = vand.u32 %v346, 4294901760
        %v563 = vsub.f32 %v346, %v562
        %v564 = vand.u32 %v563, 4294901760
        %v565 = vsub.f32 %v563, %v564
        %v566 = vand.u32 %v565, 4294901760
        %567 = vmatpush1.msra.mxu0 %v566
        %v568 = vand.u32 %v345, 4294901760
        %v569 = vsub.f32 %v345, %v568
        %v570 = vand.u32 %v569, 4294901760
        %v571 = vsub.f32 %v569, %v570
        %v572 = vand.u32 %v571, 4294901760
        %573 = vmatprep.subr.mxu0 %v572
        %v574 = vand.u32 %v344, 4294901760
        %v575 = vsub.f32 %v344, %v574
        %v576 = vand.u32 %v575, 4294901760
        %v577 = vsub.f32 %v575, %v576
        %v578 = vand.u32 %v577, 4294901760
        %579 = vmatpush1.msra.mxu0 %v578
        %v580 = vand.u32 %v343, 4294901760
        %v581 = vsub.f32 %v343, %v580
        %v582 = vand.u32 %v581, 4294901760
        %v583 = vsub.f32 %v581, %v582
        %v584 = vand.u32 %v583, 4294901760
        %585 = vmatprep.subr.mxu0 %v584
        %v586 = vand.u32 %v342, 4294901760
        %v587 = vsub.f32 %v342, %v586
        %v588 = vand.u32 %v587, 4294901760
        %v589 = vsub.f32 %v587, %v588
        %v590 = vand.u32 %v589, 4294901760
        %591 = vmatpush1.msra.mxu0 %v590
        %v592 = vand.u32 %v341, 4294901760
        %v593 = vsub.f32 %v341, %v592
        %v594 = vand.u32 %v593, 4294901760
        %v595 = vsub.f32 %v593, %v594
        %v596 = vand.u32 %v595, 4294901760
        %597 = vmatprep.subr.mxu0 %v596
        %v598 = vand.u32 %v340, 4294901760
        %v599 = vsub.f32 %v340, %v598
        %v600 = vand.u32 %v599, 4294901760
        %v601 = vsub.f32 %v599, %v600
        %v602 = vand.u32 %v601, 4294901760
        %603 = vmatpush1.msra.mxu0 %v602
        %v604 = vand.u32 %v339, 4294901760
        %v605 = vsub.f32 %v339, %v604
        %v606 = vand.u32 %v605, 4294901760
        %v607 = vsub.f32 %v605, %v606
        %v608 = vand.u32 %v607, 4294901760
        %609 = vmatprep.subr.mxu0 %v608
        %v610 = vand.u32 %v338, 4294901760
        %v611 = vsub.f32 %v338, %v610
        %v612 = vand.u32 %v611, 4294901760
        %v613 = vsub.f32 %v611, %v612
        %v614 = vand.u32 %v613, 4294901760
        %615 = vmatpush1.msra.mxu0 %v614
        %v616 = vand.u32 %v337, 4294901760
        %v617 = vsub.f32 %v337, %v616
        %v618 = vand.u32 %v617, 4294901760
        %v619 = vsub.f32 %v617, %v618
        %v620 = vand.u32 %v619, 4294901760
        %621 = vmatprep.subr.mxu0 %v620
        %v622 = vand.u32 %v336, 4294901760
        %v623 = vsub.f32 %v336, %v622
        %v624 = vand.u32 %v623, 4294901760
        %v625 = vsub.f32 %v623, %v624
        %v626 = vand.u32 %v625, 4294901760
        %627 = vmatpush1.msra.mxu0 %v626
        %v628 = vand.u32 %v335, 4294901760
        %v629 = vsub.f32 %v335, %v628
        %v630 = vand.u32 %v629, 4294901760
        %v631 = vsub.f32 %v629, %v630
        %v632 = vand.u32 %v631, 4294901760
        %633 = vmatprep.subr.mxu0 %v632
        %v634 = vand.u32 %v334, 4294901760
        %v635 = vsub.f32 %v334, %v634
        %v636 = vand.u32 %v635, 4294901760
        %v637 = vsub.f32 %v635, %v636
        %v638 = vand.u32 %v637, 4294901760
        %639 = vmatpush1.msra.mxu0 %v638
        %v640 = vand.u32 %v333, 4294901760
        %v641 = vsub.f32 %v333, %v640
        %v642 = vand.u32 %v641, 4294901760
        %v643 = vsub.f32 %v641, %v642
        %v644 = vand.u32 %v643, 4294901760
        %645 = vmatprep.subr.mxu0 %v644
        %v646 = vand.u32 %v332, 4294901760
        %v647 = vsub.f32 %v332, %v646
        %v648 = vand.u32 %v647, 4294901760
        %v649 = vsub.f32 %v647, %v648
        %v650 = vand.u32 %v649, 4294901760
        %651 = vmatpush1.msra.mxu0 %v650
        %v652 = vand.u32 %v331, 4294901760
        %v653 = vsub.f32 %v331, %v652
        %v654 = vand.u32 %v653, 4294901760
        %v655 = vsub.f32 %v653, %v654
        %v656 = vand.u32 %v655, 4294901760
        %657 = vmatprep.subr.mxu0 %v656
        %v658 = vand.u32 %v330, 4294901760
        %v659 = vsub.f32 %v330, %v658
        %v660 = vand.u32 %v659, 4294901760
        %v661 = vsub.f32 %v659, %v660
        %v662 = vand.u32 %v661, 4294901760
        %663 = vmatpush1.msra.mxu0 %v662
        %v664 = vand.u32 %v329, 4294901760
        %v665 = vsub.f32 %v329, %v664
        %v666 = vand.u32 %v665, 4294901760
        %v667 = vsub.f32 %v665, %v666
        %v668 = vand.u32 %v667, 4294901760
        %669 = vmatprep.subr.mxu0 %v668
        %v670 = vand.u32 %v328, 4294901760
        %v671 = vsub.f32 %v328, %v670
        %v672 = vand.u32 %v671, 4294901760
        %v673 = vsub.f32 %v671, %v672
        %v674 = vand.u32 %v673, 4294901760
        %675 = vmatpush1.msra.mxu0 %v674
        %v676 = vand.u32 %v327, 4294901760
        %v677 = vsub.f32 %v327, %v676
        %v678 = vand.u32 %v677, 4294901760
        %v679 = vsub.f32 %v677, %v678
        %v680 = vand.u32 %v679, 4294901760
        %681 = vmatprep.subr.mxu0 %v680
        %v682 = vand.u32 %v326, 4294901760
        %v683 = vsub.f32 %v326, %v682
        %v684 = vand.u32 %v683, 4294901760
        %v685 = vsub.f32 %v683, %v684
        %v686 = vand.u32 %v685, 4294901760
        %687 = vmatpush1.msra.mxu0 %v686
        %v688 = vand.u32 %v325, 4294901760
        %v689 = vsub.f32 %v325, %v688
        %v690 = vand.u32 %v689, 4294901760
        %v691 = vsub.f32 %v689, %v690
        %v692 = vand.u32 %v691, 4294901760
        %693 = vmatprep.subr.mxu0 %v692
        %v694 = vand.u32 %v324, 4294901760
        %v695 = vsub.f32 %v324, %v694
        %v696 = vand.u32 %v695, 4294901760
        %v697 = vsub.f32 %v695, %v696
        %v698 = vand.u32 %v697, 4294901760
        %699 = vmatpush1.msra.mxu0 %v698
        %700 = vmatprep.subr.mxu0 0.0
        %701 = vmatpush2.msra.mxu0 0.0
        %702 = vmatprep.subr.mxu0 0.0
        %703 = vmatpush2.msra.mxu0 0.0
        %704 = vmatprep.subr.mxu0 0.0
        %705 = vmatpush2.msra.mxu0 0.0
        %706 = vmatprep.subr.mxu0 0.0
        %707 = vmatpush2.msra.mxu0 0.0
        %708 = vmatprep.subr.mxu0 0.0
        %709 = vmatpush2.msra.mxu0 0.0
        %710 = vmatprep.subr.mxu0 0.0
        %711 = vmatpush2.msra.mxu0 0.0
        %712 = vmatprep.subr.mxu0 0.0
        %713 = vmatpush2.msra.mxu0 0.0
        %714 = vmatprep.subr.mxu0 0.0
        %715 = vmatpush2.msra.mxu0 0.0
        %716 = vmatprep.subr.mxu0 0.0
        %717 = vmatpush2.msra.mxu0 0.0
        %718 = vmatprep.subr.mxu0 0.0
        %719 = vmatpush2.msra.mxu0 0.0
        %720 = vmatprep.subr.mxu0 0.0
        %721 = vmatpush2.msra.mxu0 0.0
        %722 = vmatprep.subr.mxu0 0.0
        %723 = vmatpush2.msra.mxu0 0.0
        %724 = vmatprep.subr.mxu0 0.0
        %725 = vmatpush2.msra.mxu0 0.0
        %726 = vmatprep.subr.mxu0 0.0
        %727 = vmatpush2.msra.mxu0 0.0
        %728 = vmatprep.subr.mxu0 0.0
        %729 = vmatpush2.msra.mxu0 0.0
        %730 = vmatprep.subr.mxu0 0.0
        %731 = vmatpush2.msra.mxu0 0.0
        %732 = vmatprep.mubr.f32.mxu0 0.0
        %v733 = vand.u32 %v323, 4294901760
        %734 = vmatmul.mubr.f32.gmra.mxu0 %v733
        %v735 = vpop.f32.mrf.mxu0
        %v736 = vadd.f32 %v504, %v735
        %v737 = vpop.f32.mrf.mxu0
        %v738 = vadd.f32 %v506, %v737
        %739 = vdwg.mxu0
        %v740 = vand.u32 %v355, 4294901760
        %v741 = vsub.f32 %v355, %v740
        %742 = vmatprep.subr.mxu0 %v741
        %v743 = vand.u32 %v354, 4294901760
        %v744 = vsub.f32 %v354, %v743
        %745 = vmatpush1.msra.mxu0 %v744
        %v746 = vand.u32 %v353, 4294901760
        %v747 = vsub.f32 %v353, %v746
        %748 = vmatprep.subr.mxu0 %v747
        %v749 = vand.u32 %v352, 4294901760
        %v750 = vsub.f32 %v352, %v749
        %751 = vmatpush1.msra.mxu0 %v750
        %v752 = vand.u32 %v351, 4294901760
        %v753 = vsub.f32 %v351, %v752
        %754 = vmatprep.subr.mxu0 %v753
        %v755 = vand.u32 %v350, 4294901760
        %v756 = vsub.f32 %v350, %v755
        %757 = vmatpush1.msra.mxu0 %v756
        %v758 = vand.u32 %v349, 4294901760
        %v759 = vsub.f32 %v349, %v758
        %760 = vmatprep.subr.mxu0 %v759
        %v761 = vand.u32 %v348, 4294901760
        %v762 = vsub.f32 %v348, %v761
        %763 = vmatpush1.msra.mxu0 %v762
        %v764 = vand.u32 %v347, 4294901760
        %v765 = vsub.f32 %v347, %v764
        %766 = vmatprep.subr.mxu0 %v765
        %v767 = vand.u32 %v346, 4294901760
        %v768 = vsub.f32 %v346, %v767
        %769 = vmatpush1.msra.mxu0 %v768
        %v770 = vand.u32 %v345, 4294901760
        %v771 = vsub.f32 %v345, %v770
        %772 = vmatprep.subr.mxu0 %v771
        %v773 = vand.u32 %v344, 4294901760
        %v774 = vsub.f32 %v344, %v773
        %775 = vmatpush1.msra.mxu0 %v774
        %v776 = vand.u32 %v343, 4294901760
        %v777 = vsub.f32 %v343, %v776
        %778 = vmatprep.subr.mxu0 %v777
        %v779 = vand.u32 %v342, 4294901760
        %v780 = vsub.f32 %v342, %v779
        %781 = vmatpush1.msra.mxu0 %v780
        %v782 = vand.u32 %v341, 4294901760
        %v783 = vsub.f32 %v341, %v782
        %784 = vmatprep.subr.mxu0 %v783
        %v785 = vand.u32 %v340, 4294901760
        %v786 = vsub.f32 %v340, %v785
        %787 = vmatpush1.msra.mxu0 %v786
        %v788 = vand.u32 %v339, 4294901760
        %v789 = vsub.f32 %v339, %v788
        %790 = vmatprep.subr.mxu0 %v789
        %v791 = vand.u32 %v338, 4294901760
        %v792 = vsub.f32 %v338, %v791
        %793 = vmatpush1.msra.mxu0 %v792
        %v794 = vand.u32 %v337, 4294901760
        %v795 = vsub.f32 %v337, %v794
        %796 = vmatprep.subr.mxu0 %v795
        %v797 = vand.u32 %v336, 4294901760
        %v798 = vsub.f32 %v336, %v797
        %799 = vmatpush1.msra.mxu0 %v798
        %v800 = vand.u32 %v335, 4294901760
        %v801 = vsub.f32 %v335, %v800
        %802 = vmatprep.subr.mxu0 %v801
        %v803 = vand.u32 %v334, 4294901760
        %v804 = vsub.f32 %v334, %v803
        %805 = vmatpush1.msra.mxu0 %v804
        %v806 = vand.u32 %v333, 4294901760
        %v807 = vsub.f32 %v333, %v806
        %808 = vmatprep.subr.mxu0 %v807
        %v809 = vand.u32 %v332, 4294901760
        %v810 = vsub.f32 %v332, %v809
        %811 = vmatpush1.msra.mxu0 %v810
        %v812 = vand.u32 %v331, 4294901760
        %v813 = vsub.f32 %v331, %v812
        %814 = vmatprep.subr.mxu0 %v813
        %v815 = vand.u32 %v330, 4294901760
        %v816 = vsub.f32 %v330, %v815
        %817 = vmatpush1.msra.mxu0 %v816
        %v818 = vand.u32 %v329, 4294901760
        %v819 = vsub.f32 %v329, %v818
        %820 = vmatprep.subr.mxu0 %v819
        %v821 = vand.u32 %v328, 4294901760
        %v822 = vsub.f32 %v328, %v821
        %823 = vmatpush1.msra.mxu0 %v822
        %v824 = vand.u32 %v327, 4294901760
        %v825 = vsub.f32 %v327, %v824
        %826 = vmatprep.subr.mxu0 %v825
        %v827 = vand.u32 %v326, 4294901760
        %v828 = vsub.f32 %v326, %v827
        %829 = vmatpush1.msra.mxu0 %v828
        %v830 = vand.u32 %v325, 4294901760
        %v831 = vsub.f32 %v325, %v830
        %832 = vmatprep.subr.mxu0 %v831
        %v833 = vand.u32 %v324, 4294901760
        %v834 = vsub.f32 %v324, %v833
        %835 = vmatpush1.msra.mxu0 %v834
        %836 = vmatprep.subr.mxu0 0.0
        %837 = vmatpush2.msra.mxu0 0.0
        %838 = vmatprep.subr.mxu0 0.0
        %839 = vmatpush2.msra.mxu0 0.0
        %840 = vmatprep.subr.mxu0 0.0
        %841 = vmatpush2.msra.mxu0 0.0
        %842 = vmatprep.subr.mxu0 0.0
        %843 = vmatpush2.msra.mxu0 0.0
        %844 = vmatprep.subr.mxu0 0.0
        %845 = vmatpush2.msra.mxu0 0.0
        %846 = vmatprep.subr.mxu0 0.0
        %847 = vmatpush2.msra.mxu0 0.0
        %848 = vmatprep.subr.mxu0 0.0
        %849 = vmatpush2.msra.mxu0 0.0
        %850 = vmatprep.subr.mxu0 0.0
        %851 = vmatpush2.msra.mxu0 0.0
        %852 = vmatprep.subr.mxu0 0.0
        %853 = vmatpush2.msra.mxu0 0.0
        %854 = vmatprep.subr.mxu0 0.0
        %855 = vmatpush2.msra.mxu0 0.0
        %856 = vmatprep.subr.mxu0 0.0
        %857 = vmatpush2.msra.mxu0 0.0
        %858 = vmatprep.subr.mxu0 0.0
        %859 = vmatpush2.msra.mxu0 0.0
        %860 = vmatprep.subr.mxu0 0.0
        %861 = vmatpush2.msra.mxu0 0.0
        %862 = vmatprep.subr.mxu0 0.0
        %863 = vmatpush2.msra.mxu0 0.0
        %864 = vmatprep.subr.mxu0 0.0
        %865 = vmatpush2.msra.mxu0 0.0
        %866 = vmatprep.subr.mxu0 0.0
        %867 = vmatpush2.msra.mxu0 0.0
        %868 = vmatprep.mubr.f32.mxu0 0.0
        %v869 = vand.u32 %v323, 4294901760
        %v870 = vsub.f32 %v323, %v869
        %871 = vmatmul.mubr.f32.gmra.mxu0 %v870
        %v872 = vpop.f32.mrf.mxu0
        %v873 = vadd.f32 %v736, %v872
        %v874 = vpop.f32.mrf.mxu0
        %v875 = vadd.f32 %v738, %v874
        %876 = vdwg.mxu0
        %v877 = vand.u32 %v355, 4294901760
        %878 = vmatprep.subr.mxu0 %v877
        %v879 = vand.u32 %v354, 4294901760
        %880 = vmatpush1.msra.mxu0 %v879
        %v881 = vand.u32 %v353, 4294901760
        %882 = vmatprep.subr.mxu0 %v881
        %v883 = vand.u32 %v352, 4294901760
        %884 = vmatpush1.msra.mxu0 %v883
        %v885 = vand.u32 %v351, 4294901760
        %886 = vmatprep.subr.mxu0 %v885
        %v887 = vand.u32 %v350, 4294901760
        %888 = vmatpush1.msra.mxu0 %v887
        %v889 = vand.u32 %v349, 4294901760
        %890 = vmatprep.subr.mxu0 %v889
        %v891 = vand.u32 %v348, 4294901760
        %892 = vmatpush1.msra.mxu0 %v891
        %v893 = vand.u32 %v347, 4294901760
        %894 = vmatprep.subr.mxu0 %v893
        %v895 = vand.u32 %v346, 4294901760
        %896 = vmatpush1.msra.mxu0 %v895
        %v897 = vand.u32 %v345, 4294901760
        %898 = vmatprep.subr.mxu0 %v897
        %v899 = vand.u32 %v344, 4294901760
        %900 = vmatpush1.msra.mxu0 %v899
        %v901 = vand.u32 %v343, 4294901760
        %902 = vmatprep.subr.mxu0 %v901
        %v903 = vand.u32 %v342, 4294901760
        %904 = vmatpush1.msra.mxu0 %v903
        %v905 = vand.u32 %v341, 4294901760
        %906 = vmatprep.subr.mxu0 %v905
        %v907 = vand.u32 %v340, 4294901760
        %908 = vmatpush1.msra.mxu0 %v907
        %v909 = vand.u32 %v339, 4294901760
        %910 = vmatprep.subr.mxu0 %v909
        %v911 = vand.u32 %v338, 4294901760
        %912 = vmatpush1.msra.mxu0 %v911
        %v913 = vand.u32 %v337, 4294901760
        %914 = vmatprep.subr.mxu0 %v913
        %v915 = vand.u32 %v336, 4294901760
        %916 = vmatpush1.msra.mxu0 %v915
        %v917 = vand.u32 %v335, 4294901760
        %918 = vmatprep.subr.mxu0 %v917
        %v919 = vand.u32 %v334, 4294901760
        %920 = vmatpush1.msra.mxu0 %v919
        %v921 = vand.u32 %v333, 4294901760
        %922 = vmatprep.subr.mxu0 %v921
        %v923 = vand.u32 %v332, 4294901760
        %924 = vmatpush1.msra.mxu0 %v923
        %v925 = vand.u32 %v331, 4294901760
        %926 = vmatprep.subr.mxu0 %v925
        %v927 = vand.u32 %v330, 4294901760
        %928 = vmatpush1.msra.mxu0 %v927
        %v929 = vand.u32 %v329, 4294901760
        %930 = vmatprep.subr.mxu0 %v929
        %v931 = vand.u32 %v328, 4294901760
        %932 = vmatpush1.msra.mxu0 %v931
        %v933 = vand.u32 %v327, 4294901760
        %934 = vmatprep.subr.mxu0 %v933
        %v935 = vand.u32 %v326, 4294901760
        %936 = vmatpush1.msra.mxu0 %v935
        %v937 = vand.u32 %v325, 4294901760
        %938 = vmatprep.subr.mxu0 %v937
        %v939 = vand.u32 %v324, 4294901760
        %940 = vmatpush1.msra.mxu0 %v939
        %941 = vmatprep.subr.mxu0 0.0
        %942 = vmatpush2.msra.mxu0 0.0
        %943 = vmatprep.subr.mxu0 0.0
        %944 = vmatpush2.msra.mxu0 0.0
        %945 = vmatprep.subr.mxu0 0.0
        %946 = vmatpush2.msra.mxu0 0.0
        %947 = vmatprep.subr.mxu0 0.0
        %948 = vmatpush2.msra.mxu0 0.0
        %949 = vmatprep.subr.mxu0 0.0
        %950 = vmatpush2.msra.mxu0 0.0
        %951 = vmatprep.subr.mxu0 0.0
        %952 = vmatpush2.msra.mxu0 0.0
        %953 = vmatprep.subr.mxu0 0.0
        %954 = vmatpush2.msra.mxu0 0.0
        %955 = vmatprep.subr.mxu0 0.0
        %956 = vmatpush2.msra.mxu0 0.0
        %957 = vmatprep.subr.mxu0 0.0
        %958 = vmatpush2.msra.mxu0 0.0
        %959 = vmatprep.subr.mxu0 0.0
        %960 = vmatpush2.msra.mxu0 0.0
        %961 = vmatprep.subr.mxu0 0.0
        %962 = vmatpush2.msra.mxu0 0.0
        %963 = vmatprep.subr.mxu0 0.0
        %964 = vmatpush2.msra.mxu0 0.0
        %965 = vmatprep.subr.mxu0 0.0
        %966 = vmatpush2.msra.mxu0 0.0
        %967 = vmatprep.subr.mxu0 0.0
        %968 = vmatpush2.msra.mxu0 0.0
        %969 = vmatprep.subr.mxu0 0.0
        %970 = vmatpush2.msra.mxu0 0.0
        %971 = vmatprep.subr.mxu0 0.0
        %972 = vmatpush2.msra.mxu0 0.0
        %973 = vmatprep.mubr.f32.mxu0 0.0
        %v974 = vand.u32 %v323, 4294901760
        %v975 = vsub.f32 %v323, %v974
        %v976 = vand.u32 %v975, 4294901760
        %977 = vmatmul.mubr.f32.gmra.mxu0 %v976
        %v978 = vpop.f32.mrf.mxu0
        %v979 = vadd.f32 %v873, %v978
        %v980 = vpop.f32.mrf.mxu0
        %v981 = vadd.f32 %v875, %v980
        %982 = vdwg.mxu0
        %v983 = vand.u32 %v355, 4294901760
        %v984 = vsub.f32 %v355, %v983
        %v985 = vand.u32 %v984, 4294901760
        %986 = vmatprep.subr.mxu0 %v985
        %v987 = vand.u32 %v354, 4294901760
        %v988 = vsub.f32 %v354, %v987
        %v989 = vand.u32 %v988, 4294901760
        %990 = vmatpush1.msra.mxu0 %v989
        %v991 = vand.u32 %v353, 4294901760
        %v992 = vsub.f32 %v353, %v991
        %v993 = vand.u32 %v992, 4294901760
        %994 = vmatprep.subr.mxu0 %v993
        %v995 = vand.u32 %v352, 4294901760
        %v996 = vsub.f32 %v352, %v995
        %v997 = vand.u32 %v996, 4294901760
        %998 = vmatpush1.msra.mxu0 %v997
        %v999 = vand.u32 %v351, 4294901760
        %v1000 = vsub.f32 %v351, %v999
        %v1001 = vand.u32 %v1000, 4294901760
        %1002 = vmatprep.subr.mxu0 %v1001
        %v1003 = vand.u32 %v350, 4294901760
        %v1004 = vsub.f32 %v350, %v1003
        %v1005 = vand.u32 %v1004, 4294901760
        %1006 = vmatpush1.msra.mxu0 %v1005
        %v1007 = vand.u32 %v349, 4294901760
        %v1008 = vsub.f32 %v349, %v1007
        %v1009 = vand.u32 %v1008, 4294901760
        %1010 = vmatprep.subr.mxu0 %v1009
        %v1011 = vand.u32 %v348, 4294901760
        %v1012 = vsub.f32 %v348, %v1011
        %v1013 = vand.u32 %v1012, 4294901760
        %1014 = vmatpush1.msra.mxu0 %v1013
        %v1015 = vand.u32 %v347, 4294901760
        %v1016 = vsub.f32 %v347, %v1015
        %v1017 = vand.u32 %v1016, 4294901760
        %1018 = vmatprep.subr.mxu0 %v1017
        %v1019 = vand.u32 %v346, 4294901760
        %v1020 = vsub.f32 %v346, %v1019
        %v1021 = vand.u32 %v1020, 4294901760
        %1022 = vmatpush1.msra.mxu0 %v1021
        %v1023 = vand.u32 %v345, 4294901760
        %v1024 = vsub.f32 %v345, %v1023
        %v1025 = vand.u32 %v1024, 4294901760
        %1026 = vmatprep.subr.mxu0 %v1025
        %v1027 = vand.u32 %v344, 4294901760
        %v1028 = vsub.f32 %v344, %v1027
        %v1029 = vand.u32 %v1028, 4294901760
        %1030 = vmatpush1.msra.mxu0 %v1029
        %v1031 = vand.u32 %v343, 4294901760
        %v1032 = vsub.f32 %v343, %v1031
        %v1033 = vand.u32 %v1032, 4294901760
        %1034 = vmatprep.subr.mxu0 %v1033
        %v1035 = vand.u32 %v342, 4294901760
        %v1036 = vsub.f32 %v342, %v1035
        %v1037 = vand.u32 %v1036, 4294901760
        %1038 = vmatpush1.msra.mxu0 %v1037
        %v1039 = vand.u32 %v341, 4294901760
        %v1040 = vsub.f32 %v341, %v1039
        %v1041 = vand.u32 %v1040, 4294901760
        %1042 = vmatprep.subr.mxu0 %v1041
        %v1043 = vand.u32 %v340, 4294901760
        %v1044 = vsub.f32 %v340, %v1043
        %v1045 = vand.u32 %v1044, 4294901760
        %1046 = vmatpush1.msra.mxu0 %v1045
        %v1047 = vand.u32 %v339, 4294901760
        %v1048 = vsub.f32 %v339, %v1047
        %v1049 = vand.u32 %v1048, 4294901760
        %1050 = vmatprep.subr.mxu0 %v1049
        %v1051 = vand.u32 %v338, 4294901760
        %v1052 = vsub.f32 %v338, %v1051
        %v1053 = vand.u32 %v1052, 4294901760
        %1054 = vmatpush1.msra.mxu0 %v1053
        %v1055 = vand.u32 %v337, 4294901760
        %v1056 = vsub.f32 %v337, %v1055
        %v1057 = vand.u32 %v1056, 4294901760
        %1058 = vmatprep.subr.mxu0 %v1057
        %v1059 = vand.u32 %v336, 4294901760
        %v1060 = vsub.f32 %v336, %v1059
        %v1061 = vand.u32 %v1060, 4294901760
        %1062 = vmatpush1.msra.mxu0 %v1061
        %v1063 = vand.u32 %v335, 4294901760
        %v1064 = vsub.f32 %v335, %v1063
        %v1065 = vand.u32 %v1064, 4294901760
        %1066 = vmatprep.subr.mxu0 %v1065
        %v1067 = vand.u32 %v334, 4294901760
        %v1068 = vsub.f32 %v334, %v1067
        %v1069 = vand.u32 %v1068, 4294901760
        %1070 = vmatpush1.msra.mxu0 %v1069
        %v1071 = vand.u32 %v333, 4294901760
        %v1072 = vsub.f32 %v333, %v1071
        %v1073 = vand.u32 %v1072, 4294901760
        %1074 = vmatprep.subr.mxu0 %v1073
        %v1075 = vand.u32 %v332, 4294901760
        %v1076 = vsub.f32 %v332, %v1075
        %v1077 = vand.u32 %v1076, 4294901760
        %1078 = vmatpush1.msra.mxu0 %v1077
        %v1079 = vand.u32 %v331, 4294901760
        %v1080 = vsub.f32 %v331, %v1079
        %v1081 = vand.u32 %v1080, 4294901760
        %1082 = vmatprep.subr.mxu0 %v1081
        %v1083 = vand.u32 %v330, 4294901760
        %v1084 = vsub.f32 %v330, %v1083
        %v1085 = vand.u32 %v1084, 4294901760
        %1086 = vmatpush1.msra.mxu0 %v1085
        %v1087 = vand.u32 %v329, 4294901760
        %v1088 = vsub.f32 %v329, %v1087
        %v1089 = vand.u32 %v1088, 4294901760
        %1090 = vmatprep.subr.mxu0 %v1089
        %v1091 = vand.u32 %v328, 4294901760
        %v1092 = vsub.f32 %v328, %v1091
        %v1093 = vand.u32 %v1092, 4294901760
        %1094 = vmatpush1.msra.mxu0 %v1093
        %v1095 = vand.u32 %v327, 4294901760
        %v1096 = vsub.f32 %v327, %v1095
        %v1097 = vand.u32 %v1096, 4294901760
        %1098 = vmatprep.subr.mxu0 %v1097
        %v1099 = vand.u32 %v326, 4294901760
        %v1100 = vsub.f32 %v326, %v1099
        %v1101 = vand.u32 %v1100, 4294901760
        %1102 = vmatpush1.msra.mxu0 %v1101
        %v1103 = vand.u32 %v325, 4294901760
        %v1104 = vsub.f32 %v325, %v1103
        %v1105 = vand.u32 %v1104, 4294901760
        %1106 = vmatprep.subr.mxu0 %v1105
        %v1107 = vand.u32 %v324, 4294901760
        %v1108 = vsub.f32 %v324, %v1107
        %v1109 = vand.u32 %v1108, 4294901760
        %1110 = vmatpush1.msra.mxu0 %v1109
        %1111 = vmatprep.subr.mxu0 0.0
        %1112 = vmatpush2.msra.mxu0 0.0
        %1113 = vmatprep.subr.mxu0 0.0
        %1114 = vmatpush2.msra.mxu0 0.0
        %1115 = vmatprep.subr.mxu0 0.0
        %1116 = vmatpush2.msra.mxu0 0.0
        %1117 = vmatprep.subr.mxu0 0.0
        %1118 = vmatpush2.msra.mxu0 0.0
        %1119 = vmatprep.subr.mxu0 0.0
        %1120 = vmatpush2.msra.mxu0 0.0
        %1121 = vmatprep.subr.mxu0 0.0
        %1122 = vmatpush2.msra.mxu0 0.0
        %1123 = vmatprep.subr.mxu0 0.0
        %1124 = vmatpush2.msra.mxu0 0.0
        %1125 = vmatprep.subr.mxu0 0.0
        %1126 = vmatpush2.msra.mxu0 0.0
        %1127 = vmatprep.subr.mxu0 0.0
        %1128 = vmatpush2.msra.mxu0 0.0
        %1129 = vmatprep.subr.mxu0 0.0
        %1130 = vmatpush2.msra.mxu0 0.0
        %1131 = vmatprep.subr.mxu0 0.0
        %1132 = vmatpush2.msra.mxu0 0.0
        %1133 = vmatprep.subr.mxu0 0.0
        %1134 = vmatpush2.msra.mxu0 0.0
        %1135 = vmatprep.subr.mxu0 0.0
        %1136 = vmatpush2.msra.mxu0 0.0
        %1137 = vmatprep.subr.mxu0 0.0
        %1138 = vmatpush2.msra.mxu0 0.0
        %1139 = vmatprep.subr.mxu0 0.0
        %1140 = vmatpush2.msra.mxu0 0.0
        %1141 = vmatprep.subr.mxu0 0.0
        %1142 = vmatpush2.msra.mxu0 0.0
        %1143 = vmatprep.mubr.f32.mxu0 0.0
        %v1144 = vand.u32 %v323, 4294901760
        %1145 = vmatmul.mubr.f32.gmra.mxu0 %v1144
        %v1146 = vpop.f32.mrf.mxu0
        %v1147 = vadd.f32 %v979, %v1146
        %v1148 = vpop.f32.mrf.mxu0
        %v1149 = vadd.f32 %v981, %v1148
        %1150 = vdwg.mxu0
        %v1151 = vand.u32 %v355, 4294901760
        %1152 = vmatprep.subr.mxu0 %v1151
        %v1153 = vand.u32 %v354, 4294901760
        %1154 = vmatpush1.msra.mxu0 %v1153
        %v1155 = vand.u32 %v353, 4294901760
        %1156 = vmatprep.subr.mxu0 %v1155
        %v1157 = vand.u32 %v352, 4294901760
        %1158 = vmatpush1.msra.mxu0 %v1157
        %v1159 = vand.u32 %v351, 4294901760
        %1160 = vmatprep.subr.mxu0 %v1159
        %v1161 = vand.u32 %v350, 4294901760
        %1162 = vmatpush1.msra.mxu0 %v1161
        %v1163 = vand.u32 %v349, 4294901760
        %1164 = vmatprep.subr.mxu0 %v1163
        %v1165 = vand.u32 %v348, 4294901760
        %1166 = vmatpush1.msra.mxu0 %v1165
        %v1167 = vand.u32 %v347, 4294901760
        %1168 = vmatprep.subr.mxu0 %v1167
        %v1169 = vand.u32 %v346, 4294901760
        %1170 = vmatpush1.msra.mxu0 %v1169
        %v1171 = vand.u32 %v345, 4294901760
        %1172 = vmatprep.subr.mxu0 %v1171
        %v1173 = vand.u32 %v344, 4294901760
        %1174 = vmatpush1.msra.mxu0 %v1173
        %v1175 = vand.u32 %v343, 4294901760
        %1176 = vmatprep.subr.mxu0 %v1175
        %v1177 = vand.u32 %v342, 4294901760
        %1178 = vmatpush1.msra.mxu0 %v1177
        %v1179 = vand.u32 %v341, 4294901760
        %1180 = vmatprep.subr.mxu0 %v1179
        %v1181 = vand.u32 %v340, 4294901760
        %1182 = vmatpush1.msra.mxu0 %v1181
        %v1183 = vand.u32 %v339, 4294901760
        %1184 = vmatprep.subr.mxu0 %v1183
        %v1185 = vand.u32 %v338, 4294901760
        %1186 = vmatpush1.msra.mxu0 %v1185
        %v1187 = vand.u32 %v337, 4294901760
        %1188 = vmatprep.subr.mxu0 %v1187
        %v1189 = vand.u32 %v336, 4294901760
        %1190 = vmatpush1.msra.mxu0 %v1189
        %v1191 = vand.u32 %v335, 4294901760
        %1192 = vmatprep.subr.mxu0 %v1191
        %v1193 = vand.u32 %v334, 4294901760
        %1194 = vmatpush1.msra.mxu0 %v1193
        %v1195 = vand.u32 %v333, 4294901760
        %1196 = vmatprep.subr.mxu0 %v1195
        %v1197 = vand.u32 %v332, 4294901760
        %1198 = vmatpush1.msra.mxu0 %v1197
        %v1199 = vand.u32 %v331, 4294901760
        %1200 = vmatprep.subr.mxu0 %v1199
        %v1201 = vand.u32 %v330, 4294901760
        %1202 = vmatpush1.msra.mxu0 %v1201
        %v1203 = vand.u32 %v329, 4294901760
        %1204 = vmatprep.subr.mxu0 %v1203
        %v1205 = vand.u32 %v328, 4294901760
        %1206 = vmatpush1.msra.mxu0 %v1205
        %v1207 = vand.u32 %v327, 4294901760
        %1208 = vmatprep.subr.mxu0 %v1207
        %v1209 = vand.u32 %v326, 4294901760
        %1210 = vmatpush1.msra.mxu0 %v1209
        %v1211 = vand.u32 %v325, 4294901760
        %1212 = vmatprep.subr.mxu0 %v1211
        %v1213 = vand.u32 %v324, 4294901760
        %1214 = vmatpush1.msra.mxu0 %v1213
        %1215 = vmatprep.subr.mxu0 0.0
        %1216 = vmatpush2.msra.mxu0 0.0
        %1217 = vmatprep.subr.mxu0 0.0
        %1218 = vmatpush2.msra.mxu0 0.0
        %1219 = vmatprep.subr.mxu0 0.0
        %1220 = vmatpush2.msra.mxu0 0.0
        %1221 = vmatprep.subr.mxu0 0.0
        %1222 = vmatpush2.msra.mxu0 0.0
        %1223 = vmatprep.subr.mxu0 0.0
        %1224 = vmatpush2.msra.mxu0 0.0
        %1225 = vmatprep.subr.mxu0 0.0
        %1226 = vmatpush2.msra.mxu0 0.0
        %1227 = vmatprep.subr.mxu0 0.0
        %1228 = vmatpush2.msra.mxu0 0.0
        %1229 = vmatprep.subr.mxu0 0.0
        %1230 = vmatpush2.msra.mxu0 0.0
        %1231 = vmatprep.subr.mxu0 0.0
        %1232 = vmatpush2.msra.mxu0 0.0
        %1233 = vmatprep.subr.mxu0 0.0
        %1234 = vmatpush2.msra.mxu0 0.0
        %1235 = vmatprep.subr.mxu0 0.0
        %1236 = vmatpush2.msra.mxu0 0.0
        %1237 = vmatprep.subr.mxu0 0.0
        %1238 = vmatpush2.msra.mxu0 0.0
        %1239 = vmatprep.subr.mxu0 0.0
        %1240 = vmatpush2.msra.mxu0 0.0
        %1241 = vmatprep.subr.mxu0 0.0
        %1242 = vmatpush2.msra.mxu0 0.0
        %1243 = vmatprep.subr.mxu0 0.0
        %1244 = vmatpush2.msra.mxu0 0.0
        %1245 = vmatprep.subr.mxu0 0.0
        %1246 = vmatpush2.msra.mxu0 0.0
        %1247 = vmatprep.mubr.f32.mxu0 0.0
        %v1248 = vand.u32 %v323, 4294901760
        %1249 = vmatmul.mubr.f32.gmra.mxu0 %v1248
        %v1250 = vpop.f32.mrf.mxu0
        %v1251 = vadd.f32 %v1147, %v1250
        %v1252 = vpop.f32.mrf.mxu0
        %v1253 = vadd.f32 %v1149, %v1252
        %1254 = vdwg.mxu0
        %v1255 = vmax.f32 %v1251, 0.0
        %v1256 = vmax.f32 %v1253, 0.0
        %v1257 = vld [vmem:[#allocation2] sm:$0xff]
        %1258 = vmatprep.subr.mxu0 0.0
        %v1259 = vand.u32 %v371, 4294901760
        %1260 = vmatpush1.msra.mxu0 %v1259
        %1261 = vmatprep.subr.mxu0 0.0
        %v1262 = vand.u32 %v370, 4294901760
        %1263 = vmatpush1.msra.mxu0 %v1262
        %1264 = vmatprep.subr.mxu0 0.0
        %v1265 = vand.u32 %v369, 4294901760
        %1266 = vmatpush1.msra.mxu0 %v1265
        %1267 = vmatprep.subr.mxu0 0.0
        %v1268 = vand.u32 %v368, 4294901760
        %1269 = vmatpush1.msra.mxu0 %v1268
        %1270 = vmatprep.subr.mxu0 0.0
        %v1271 = vand.u32 %v367, 4294901760
        %1272 = vmatpush1.msra.mxu0 %v1271
        %1273 = vmatprep.subr.mxu0 0.0
        %v1274 = vand.u32 %v366, 4294901760
        %1275 = vmatpush1.msra.mxu0 %v1274
        %1276 = vmatprep.subr.mxu0 0.0
        %v1277 = vand.u32 %v365, 4294901760
        %1278 = vmatpush1.msra.mxu0 %v1277
        %1279 = vmatprep.subr.mxu0 0.0
        %v1280 = vand.u32 %v364, 4294901760
        %1281 = vmatpush1.msra.mxu0 %v1280
        %1282 = vmatprep.subr.mxu0 0.0
        %v1283 = vand.u32 %v363, 4294901760
        %1284 = vmatpush1.msra.mxu0 %v1283
        %1285 = vmatprep.subr.mxu0 0.0
        %v1286 = vand.u32 %v362, 4294901760
        %1287 = vmatpush1.msra.mxu0 %v1286
        %1288 = vmatprep.subr.mxu0 0.0
        %v1289 = vand.u32 %v361, 4294901760
        %1290 = vmatpush1.msra.mxu0 %v1289
        %1291 = vmatprep.subr.mxu0 0.0
        %v1292 = vand.u32 %v360, 4294901760
        %1293 = vmatpush1.msra.mxu0 %v1292
        %1294 = vmatprep.subr.mxu0 0.0
        %v1295 = vand.u32 %v359, 4294901760
        %1296 = vmatpush1.msra.mxu0 %v1295
        %1297 = vmatprep.subr.mxu0 0.0
        %v1298 = vand.u32 %v358, 4294901760
        %1299 = vmatpush1.msra.mxu0 %v1298
        %1300 = vmatprep.subr.mxu0 0.0
        %v1301 = vand.u32 %v357, 4294901760
        %1302 = vmatpush1.msra.mxu0 %v1301
        %1303 = vmatprep.subr.mxu0 0.0
        %v1304 = vand.u32 %v356, 4294901760
        %1305 = vmatpush1.msra.mxu0 %v1304
        %1306 = vmatprep.subr.mxu0 0.0
        %v1307 = vand.u32 %v387, 4294901760
        %1308 = vmatpush2.msra.mxu0 %v1307
        %1309 = vmatprep.subr.mxu0 0.0
        %v1310 = vand.u32 %v386, 4294901760
        %1311 = vmatpush2.msra.mxu0 %v1310
        %1312 = vmatprep.subr.mxu0 0.0
        %v1313 = vand.u32 %v385, 4294901760
        %1314 = vmatpush2.msra.mxu0 %v1313
        %1315 = vmatprep.subr.mxu0 0.0
        %v1316 = vand.u32 %v384, 4294901760
        %1317 = vmatpush2.msra.mxu0 %v1316
        %1318 = vmatprep.subr.mxu0 0.0
        %v1319 = vand.u32 %v383, 4294901760
        %1320 = vmatpush2.msra.mxu0 %v1319
        %1321 = vmatprep.subr.mxu0 0.0
        %v1322 = vand.u32 %v382, 4294901760
        %1323 = vmatpush2.msra.mxu0 %v1322
        %1324 = vmatprep.subr.mxu0 0.0
        %v1325 = vand.u32 %v381, 4294901760
        %1326 = vmatpush2.msra.mxu0 %v1325
        %1327 = vmatprep.subr.mxu0 0.0
        %v1328 = vand.u32 %v380, 4294901760
        %1329 = vmatpush2.msra.mxu0 %v1328
        %1330 = vmatprep.subr.mxu0 0.0
        %v1331 = vand.u32 %v379, 4294901760
        %1332 = vmatpush2.msra.mxu0 %v1331
        %1333 = vmatprep.subr.mxu0 0.0
        %v1334 = vand.u32 %v378, 4294901760
        %1335 = vmatpush2.msra.mxu0 %v1334
        %1336 = vmatprep.subr.mxu0 0.0
        %v1337 = vand.u32 %v377, 4294901760
        %1338 = vmatpush2.msra.mxu0 %v1337
        %1339 = vmatprep.subr.mxu0 0.0
        %v1340 = vand.u32 %v376, 4294901760
        %1341 = vmatpush2.msra.mxu0 %v1340
        %1342 = vmatprep.subr.mxu0 0.0
        %v1343 = vand.u32 %v375, 4294901760
        %1344 = vmatpush2.msra.mxu0 %v1343
        %1345 = vmatprep.subr.mxu0 0.0
        %v1346 = vand.u32 %v374, 4294901760
        %1347 = vmatpush2.msra.mxu0 %v1346
        %1348 = vmatprep.subr.mxu0 0.0
        %v1349 = vand.u32 %v373, 4294901760
        %1350 = vmatpush2.msra.mxu0 %v1349
        %1351 = vmatprep.subr.mxu0 0.0
        %v1352 = vand.u32 %v372, 4294901760
        %1353 = vmatpush2.msra.mxu0 %v1352
        %v1354 = vand.u32 %v1256, 4294901760
        %v1355 = vsub.f32 %v1256, %v1354
        %v1356 = vand.u32 %v1355, 4294901760
        %v1357 = vsub.f32 %v1355, %v1356
        %v1358 = vand.u32 %v1357, 4294901760
        %1359 = vmatprep.mubr.f32.mxu0 %v1358
        %v1360 = vand.u32 %v1255, 4294901760
        %v1361 = vsub.f32 %v1255, %v1360
        %v1362 = vand.u32 %v1361, 4294901760
        %v1363 = vsub.f32 %v1361, %v1362
        %v1364 = vand.u32 %v1363, 4294901760
        %1365 = vmatmul.mubr.f32.gmra.mxu0 %v1364
        %v1366 = vpop.f32.mrf.mxu0
        %v1367 = vadd.f32 0.0, %v1366
        %v1368 = vpop.f32.mrf.mxu0
        %1369 = vdwg.mxu0
        %1370 = vmatprep.subr.mxu0 0.0
        %v1371 = vand.u32 %v371, 4294901760
        %v1372 = vsub.f32 %v371, %v1371
        %v1373 = vand.u32 %v1372, 4294901760
        %v1374 = vsub.f32 %v1372, %v1373
        %v1375 = vand.u32 %v1374, 4294901760
        %1376 = vmatpush1.msra.mxu0 %v1375
        %1377 = vmatprep.subr.mxu0 0.0
        %v1378 = vand.u32 %v370, 4294901760
        %v1379 = vsub.f32 %v370, %v1378
        %v1380 = vand.u32 %v1379, 4294901760
        %v1381 = vsub.f32 %v1379, %v1380
        %v1382 = vand.u32 %v1381, 4294901760
        %1383 = vmatpush1.msra.mxu0 %v1382
        %1384 = vmatprep.subr.mxu0 0.0
        %v1385 = vand.u32 %v369, 4294901760
        %v1386 = vsub.f32 %v369, %v1385
        %v1387 = vand.u32 %v1386, 4294901760
        %v1388 = vsub.f32 %v1386, %v1387
        %v1389 = vand.u32 %v1388, 4294901760
        %1390 = vmatpush1.msra.mxu0 %v1389
        %1391 = vmatprep.subr.mxu0 0.0
        %v1392 = vand.u32 %v368, 4294901760
        %v1393 = vsub.f32 %v368, %v1392
        %v1394 = vand.u32 %v1393, 4294901760
        %v1395 = vsub.f32 %v1393, %v1394
        %v1396 = vand.u32 %v1395, 4294901760
        %1397 = vmatpush1.msra.mxu0 %v1396
        %1398 = vmatprep.subr.mxu0 0.0
        %v1399 = vand.u32 %v367, 4294901760
        %v1400 = vsub.f32 %v367, %v1399
        %v1401 = vand.u32 %v1400, 4294901760
        %v1402 = vsub.f32 %v1400, %v1401
        %v1403 = vand.u32 %v1402, 4294901760
        %1404 = vmatpush1.msra.mxu0 %v1403
        %1405 = vmatprep.subr.mxu0 0.0
        %v1406 = vand.u32 %v366, 4294901760
        %v1407 = vsub.f32 %v366, %v1406
        %v1408 = vand.u32 %v1407, 4294901760
        %v1409 = vsub.f32 %v1407, %v1408
        %v1410 = vand.u32 %v1409, 4294901760
        %1411 = vmatpush1.msra.mxu0 %v1410
        %1412 = vmatprep.subr.mxu0 0.0
        %v1413 = vand.u32 %v365, 4294901760
        %v1414 = vsub.f32 %v365, %v1413
        %v1415 = vand.u32 %v1414, 4294901760
        %v1416 = vsub.f32 %v1414, %v1415
        %v1417 = vand.u32 %v1416, 4294901760
        %1418 = vmatpush1.msra.mxu0 %v1417
        %1419 = vmatprep.subr.mxu0 0.0
        %v1420 = vand.u32 %v364, 4294901760
        %v1421 = vsub.f32 %v364, %v1420
        %v1422 = vand.u32 %v1421, 4294901760
        %v1423 = vsub.f32 %v1421, %v1422
        %v1424 = vand.u32 %v1423, 4294901760
        %1425 = vmatpush1.msra.mxu0 %v1424
        %1426 = vmatprep.subr.mxu0 0.0
        %v1427 = vand.u32 %v363, 4294901760
        %v1428 = vsub.f32 %v363, %v1427
        %v1429 = vand.u32 %v1428, 4294901760
        %v1430 = vsub.f32 %v1428, %v1429
        %v1431 = vand.u32 %v1430, 4294901760
        %1432 = vmatpush1.msra.mxu0 %v1431
        %1433 = vmatprep.subr.mxu0 0.0
        %v1434 = vand.u32 %v362, 4294901760
        %v1435 = vsub.f32 %v362, %v1434
        %v1436 = vand.u32 %v1435, 4294901760
        %v1437 = vsub.f32 %v1435, %v1436
        %v1438 = vand.u32 %v1437, 4294901760
        %1439 = vmatpush1.msra.mxu0 %v1438
        %1440 = vmatprep.subr.mxu0 0.0
        %v1441 = vand.u32 %v361, 4294901760
        %v1442 = vsub.f32 %v361, %v1441
        %v1443 = vand.u32 %v1442, 4294901760
        %v1444 = vsub.f32 %v1442, %v1443
        %v1445 = vand.u32 %v1444, 4294901760
        %1446 = vmatpush1.msra.mxu0 %v1445
        %1447 = vmatprep.subr.mxu0 0.0
        %v1448 = vand.u32 %v360, 4294901760
        %v1449 = vsub.f32 %v360, %v1448
        %v1450 = vand.u32 %v1449, 4294901760
        %v1451 = vsub.f32 %v1449, %v1450
        %v1452 = vand.u32 %v1451, 4294901760
        %1453 = vmatpush1.msra.mxu0 %v1452
        %1454 = vmatprep.subr.mxu0 0.0
        %v1455 = vand.u32 %v359, 4294901760
        %v1456 = vsub.f32 %v359, %v1455
        %v1457 = vand.u32 %v1456, 4294901760
        %v1458 = vsub.f32 %v1456, %v1457
        %v1459 = vand.u32 %v1458, 4294901760
        %1460 = vmatpush1.msra.mxu0 %v1459
        %1461 = vmatprep.subr.mxu0 0.0
        %v1462 = vand.u32 %v358, 4294901760
        %v1463 = vsub.f32 %v358, %v1462
        %v1464 = vand.u32 %v1463, 4294901760
        %v1465 = vsub.f32 %v1463, %v1464
        %v1466 = vand.u32 %v1465, 4294901760
        %1467 = vmatpush1.msra.mxu0 %v1466
        %1468 = vmatprep.subr.mxu0 0.0
        %v1469 = vand.u32 %v357, 4294901760
        %v1470 = vsub.f32 %v357, %v1469
        %v1471 = vand.u32 %v1470, 4294901760
        %v1472 = vsub.f32 %v1470, %v1471
        %v1473 = vand.u32 %v1472, 4294901760
        %1474 = vmatpush1.msra.mxu0 %v1473
        %1475 = vmatprep.subr.mxu0 0.0
        %v1476 = vand.u32 %v356, 4294901760
        %v1477 = vsub.f32 %v356, %v1476
        %v1478 = vand.u32 %v1477, 4294901760
        %v1479 = vsub.f32 %v1477, %v1478
        %v1480 = vand.u32 %v1479, 4294901760
        %1481 = vmatpush1.msra.mxu0 %v1480
        %1482 = vmatprep.subr.mxu0 0.0
        %v1483 = vand.u32 %v387, 4294901760
        %v1484 = vsub.f32 %v387, %v1483
        %v1485 = vand.u32 %v1484, 4294901760
        %v1486 = vsub.f32 %v1484, %v1485
        %v1487 = vand.u32 %v1486, 4294901760
        %1488 = vmatpush2.msra.mxu0 %v1487
        %1489 = vmatprep.subr.mxu0 0.0
        %v1490 = vand.u32 %v386, 4294901760
        %v1491 = vsub.f32 %v386, %v1490
        %v1492 = vand.u32 %v1491, 4294901760
        %v1493 = vsub.f32 %v1491, %v1492
        %v1494 = vand.u32 %v1493, 4294901760
        %1495 = vmatpush2.msra.mxu0 %v1494
        %1496 = vmatprep.subr.mxu0 0.0
        %v1497 = vand.u32 %v385, 4294901760
        %v1498 = vsub.f32 %v385, %v1497
        %v1499 = vand.u32 %v1498, 4294901760
        %v1500 = vsub.f32 %v1498, %v1499
        %v1501 = vand.u32 %v1500, 4294901760
        %1502 = vmatpush2.msra.mxu0 %v1501
        %1503 = vmatprep.subr.mxu0 0.0
        %v1504 = vand.u32 %v384, 4294901760
        %v1505 = vsub.f32 %v384, %v1504
        %v1506 = vand.u32 %v1505, 4294901760
        %v1507 = vsub.f32 %v1505, %v1506
        %v1508 = vand.u32 %v1507, 4294901760
        %1509 = vmatpush2.msra.mxu0 %v1508
        %1510 = vmatprep.subr.mxu0 0.0
        %v1511 = vand.u32 %v383, 4294901760
        %v1512 = vsub.f32 %v383, %v1511
        %v1513 = vand.u32 %v1512, 4294901760
        %v1514 = vsub.f32 %v1512, %v1513
        %v1515 = vand.u32 %v1514, 4294901760
        %1516 = vmatpush2.msra.mxu0 %v1515
        %1517 = vmatprep.subr.mxu0 0.0
        %v1518 = vand.u32 %v382, 4294901760
        %v1519 = vsub.f32 %v382, %v1518
        %v1520 = vand.u32 %v1519, 4294901760
        %v1521 = vsub.f32 %v1519, %v1520
        %v1522 = vand.u32 %v1521, 4294901760
        %1523 = vmatpush2.msra.mxu0 %v1522
        %1524 = vmatprep.subr.mxu0 0.0
        %v1525 = vand.u32 %v381, 4294901760
        %v1526 = vsub.f32 %v381, %v1525
        %v1527 = vand.u32 %v1526, 4294901760
        %v1528 = vsub.f32 %v1526, %v1527
        %v1529 = vand.u32 %v1528, 4294901760
        %1530 = vmatpush2.msra.mxu0 %v1529
        %1531 = vmatprep.subr.mxu0 0.0
        %v1532 = vand.u32 %v380, 4294901760
        %v1533 = vsub.f32 %v380, %v1532
        %v1534 = vand.u32 %v1533, 4294901760
        %v1535 = vsub.f32 %v1533, %v1534
        %v1536 = vand.u32 %v1535, 4294901760
        %1537 = vmatpush2.msra.mxu0 %v1536
        %1538 = vmatprep.subr.mxu0 0.0
        %v1539 = vand.u32 %v379, 4294901760
        %v1540 = vsub.f32 %v379, %v1539
        %v1541 = vand.u32 %v1540, 4294901760
        %v1542 = vsub.f32 %v1540, %v1541
        %v1543 = vand.u32 %v1542, 4294901760
        %1544 = vmatpush2.msra.mxu0 %v1543
        %1545 = vmatprep.subr.mxu0 0.0
        %v1546 = vand.u32 %v378, 4294901760
        %v1547 = vsub.f32 %v378, %v1546
        %v1548 = vand.u32 %v1547, 4294901760
        %v1549 = vsub.f32 %v1547, %v1548
        %v1550 = vand.u32 %v1549, 4294901760
        %1551 = vmatpush2.msra.mxu0 %v1550
        %1552 = vmatprep.subr.mxu0 0.0
        %v1553 = vand.u32 %v377, 4294901760
        %v1554 = vsub.f32 %v377, %v1553
        %v1555 = vand.u32 %v1554, 4294901760
        %v1556 = vsub.f32 %v1554, %v1555
        %v1557 = vand.u32 %v1556, 4294901760
        %1558 = vmatpush2.msra.mxu0 %v1557
        %1559 = vmatprep.subr.mxu0 0.0
        %v1560 = vand.u32 %v376, 4294901760
        %v1561 = vsub.f32 %v376, %v1560
        %v1562 = vand.u32 %v1561, 4294901760
        %v1563 = vsub.f32 %v1561, %v1562
        %v1564 = vand.u32 %v1563, 4294901760
        %1565 = vmatpush2.msra.mxu0 %v1564
        %1566 = vmatprep.subr.mxu0 0.0
        %v1567 = vand.u32 %v375, 4294901760
        %v1568 = vsub.f32 %v375, %v1567
        %v1569 = vand.u32 %v1568, 4294901760
        %v1570 = vsub.f32 %v1568, %v1569
        %v1571 = vand.u32 %v1570, 4294901760
        %1572 = vmatpush2.msra.mxu0 %v1571
        %1573 = vmatprep.subr.mxu0 0.0
        %v1574 = vand.u32 %v374, 4294901760
        %v1575 = vsub.f32 %v374, %v1574
        %v1576 = vand.u32 %v1575, 4294901760
        %v1577 = vsub.f32 %v1575, %v1576
        %v1578 = vand.u32 %v1577, 4294901760
        %1579 = vmatpush2.msra.mxu0 %v1578
        %1580 = vmatprep.subr.mxu0 0.0
        %v1581 = vand.u32 %v373, 4294901760
        %v1582 = vsub.f32 %v373, %v1581
        %v1583 = vand.u32 %v1582, 4294901760
        %v1584 = vsub.f32 %v1582, %v1583
        %v1585 = vand.u32 %v1584, 4294901760
        %1586 = vmatpush2.msra.mxu0 %v1585
        %1587 = vmatprep.subr.mxu0 0.0
        %v1588 = vand.u32 %v372, 4294901760
        %v1589 = vsub.f32 %v372, %v1588
        %v1590 = vand.u32 %v1589, 4294901760
        %v1591 = vsub.f32 %v1589, %v1590
        %v1592 = vand.u32 %v1591, 4294901760
        %1593 = vmatpush2.msra.mxu0 %v1592
        %v1594 = vand.u32 %v1256, 4294901760
        %1595 = vmatprep.mubr.f32.mxu0 %v1594
        %v1596 = vand.u32 %v1255, 4294901760
        %1597 = vmatmul.mubr.f32.gmra.mxu0 %v1596
        %v1598 = vpop.f32.mrf.mxu0
        %v1599 = vadd.f32 %v1367, %v1598
        %v1600 = vpop.f32.mrf.mxu0
        %1601 = vdwg.mxu0
        %1602 = vmatprep.subr.mxu0 0.0
        %v1603 = vand.u32 %v371, 4294901760
        %v1604 = vsub.f32 %v371, %v1603
        %1605 = vmatpush1.msra.mxu0 %v1604
        %1606 = vmatprep.subr.mxu0 0.0
        %v1607 = vand.u32 %v370, 4294901760
        %v1608 = vsub.f32 %v370, %v1607
        %1609 = vmatpush1.msra.mxu0 %v1608
        %1610 = vmatprep.subr.mxu0 0.0
        %v1611 = vand.u32 %v369, 4294901760
        %v1612 = vsub.f32 %v369, %v1611
        %1613 = vmatpush1.msra.mxu0 %v1612
        %1614 = vmatprep.subr.mxu0 0.0
        %v1615 = vand.u32 %v368, 4294901760
        %v1616 = vsub.f32 %v368, %v1615
        %1617 = vmatpush1.msra.mxu0 %v1616
        %1618 = vmatprep.subr.mxu0 0.0
        %v1619 = vand.u32 %v367, 4294901760
        %v1620 = vsub.f32 %v367, %v1619
        %1621 = vmatpush1.msra.mxu0 %v1620
        %1622 = vmatprep.subr.mxu0 0.0
        %v1623 = vand.u32 %v366, 4294901760
        %v1624 = vsub.f32 %v366, %v1623
        %1625 = vmatpush1.msra.mxu0 %v1624
        %1626 = vmatprep.subr.mxu0 0.0
        %v1627 = vand.u32 %v365, 4294901760
        %v1628 = vsub.f32 %v365, %v1627
        %1629 = vmatpush1.msra.mxu0 %v1628
        %1630 = vmatprep.subr.mxu0 0.0
        %v1631 = vand.u32 %v364, 4294901760
        %v1632 = vsub.f32 %v364, %v1631
        %1633 = vmatpush1.msra.mxu0 %v1632
        %1634 = vmatprep.subr.mxu0 0.0
        %v1635 = vand.u32 %v363, 4294901760
        %v1636 = vsub.f32 %v363, %v1635
        %1637 = vmatpush1.msra.mxu0 %v1636
        %1638 = vmatprep.subr.mxu0 0.0
        %v1639 = vand.u32 %v362, 4294901760
        %v1640 = vsub.f32 %v362, %v1639
        %1641 = vmatpush1.msra.mxu0 %v1640
        %1642 = vmatprep.subr.mxu0 0.0
        %v1643 = vand.u32 %v361, 4294901760
        %v1644 = vsub.f32 %v361, %v1643
        %1645 = vmatpush1.msra.mxu0 %v1644
        %1646 = vmatprep.subr.mxu0 0.0
        %v1647 = vand.u32 %v360, 4294901760
        %v1648 = vsub.f32 %v360, %v1647
        %1649 = vmatpush1.msra.mxu0 %v1648
        %1650 = vmatprep.subr.mxu0 0.0
        %v1651 = vand.u32 %v359, 4294901760
        %v1652 = vsub.f32 %v359, %v1651
        %1653 = vmatpush1.msra.mxu0 %v1652
        %1654 = vmatprep.subr.mxu0 0.0
        %v1655 = vand.u32 %v358, 4294901760
        %v1656 = vsub.f32 %v358, %v1655
        %1657 = vmatpush1.msra.mxu0 %v1656
        %1658 = vmatprep.subr.mxu0 0.0
        %v1659 = vand.u32 %v357, 4294901760
        %v1660 = vsub.f32 %v357, %v1659
        %1661 = vmatpush1.msra.mxu0 %v1660
        %1662 = vmatprep.subr.mxu0 0.0
        %v1663 = vand.u32 %v356, 4294901760
        %v1664 = vsub.f32 %v356, %v1663
        %1665 = vmatpush1.msra.mxu0 %v1664
        %1666 = vmatprep.subr.mxu0 0.0
        %v1667 = vand.u32 %v387, 4294901760
        %v1668 = vsub.f32 %v387, %v1667
        %1669 = vmatpush2.msra.mxu0 %v1668
        %1670 = vmatprep.subr.mxu0 0.0
        %v1671 = vand.u32 %v386, 4294901760
        %v1672 = vsub.f32 %v386, %v1671
        %1673 = vmatpush2.msra.mxu0 %v1672
        %1674 = vmatprep.subr.mxu0 0.0
        %v1675 = vand.u32 %v385, 4294901760
        %v1676 = vsub.f32 %v385, %v1675
        %1677 = vmatpush2.msra.mxu0 %v1676
        %1678 = vmatprep.subr.mxu0 0.0
        %v1679 = vand.u32 %v384, 4294901760
        %v1680 = vsub.f32 %v384, %v1679
        %1681 = vmatpush2.msra.mxu0 %v1680
        %1682 = vmatprep.subr.mxu0 0.0
        %v1683 = vand.u32 %v383, 4294901760
        %v1684 = vsub.f32 %v383, %v1683
        %1685 = vmatpush2.msra.mxu0 %v1684
        %1686 = vmatprep.subr.mxu0 0.0
        %v1687 = vand.u32 %v382, 4294901760
        %v1688 = vsub.f32 %v382, %v1687
        %1689 = vmatpush2.msra.mxu0 %v1688
        %1690 = vmatprep.subr.mxu0 0.0
        %v1691 = vand.u32 %v381, 4294901760
        %v1692 = vsub.f32 %v381, %v1691
        %1693 = vmatpush2.msra.mxu0 %v1692
        %1694 = vmatprep.subr.mxu0 0.0
        %v1695 = vand.u32 %v380, 4294901760
        %v1696 = vsub.f32 %v380, %v1695
        %1697 = vmatpush2.msra.mxu0 %v1696
        %1698 = vmatprep.subr.mxu0 0.0
        %v1699 = vand.u32 %v379, 4294901760
        %v1700 = vsub.f32 %v379, %v1699
        %1701 = vmatpush2.msra.mxu0 %v1700
        %1702 = vmatprep.subr.mxu0 0.0
        %v1703 = vand.u32 %v378, 4294901760
        %v1704 = vsub.f32 %v378, %v1703
        %1705 = vmatpush2.msra.mxu0 %v1704
        %1706 = vmatprep.subr.mxu0 0.0
        %v1707 = vand.u32 %v377, 4294901760
        %v1708 = vsub.f32 %v377, %v1707
        %1709 = vmatpush2.msra.mxu0 %v1708
        %1710 = vmatprep.subr.mxu0 0.0
        %v1711 = vand.u32 %v376, 4294901760
        %v1712 = vsub.f32 %v376, %v1711
        %1713 = vmatpush2.msra.mxu0 %v1712
        %1714 = vmatprep.subr.mxu0 0.0
        %v1715 = vand.u32 %v375, 4294901760
        %v1716 = vsub.f32 %v375, %v1715
        %1717 = vmatpush2.msra.mxu0 %v1716
        %1718 = vmatprep.subr.mxu0 0.0
        %v1719 = vand.u32 %v374, 4294901760
        %v1720 = vsub.f32 %v374, %v1719
        %1721 = vmatpush2.msra.mxu0 %v1720
        %1722 = vmatprep.subr.mxu0 0.0
        %v1723 = vand.u32 %v373, 4294901760
        %v1724 = vsub.f32 %v373, %v1723
        %1725 = vmatpush2.msra.mxu0 %v1724
        %1726 = vmatprep.subr.mxu0 0.0
        %v1727 = vand.u32 %v372, 4294901760
        %v1728 = vsub.f32 %v372, %v1727
        %1729 = vmatpush2.msra.mxu0 %v1728
        %v1730 = vand.u32 %v1256, 4294901760
        %v1731 = vsub.f32 %v1256, %v1730
        %1732 = vmatprep.mubr.f32.mxu0 %v1731
        %v1733 = vand.u32 %v1255, 4294901760
        %v1734 = vsub.f32 %v1255, %v1733
        %1735 = vmatmul.mubr.f32.gmra.mxu0 %v1734
        %v1736 = vpop.f32.mrf.mxu0
        %v1737 = vadd.f32 %v1599, %v1736
        %v1738 = vpop.f32.mrf.mxu0
        %1739 = vdwg.mxu0
        %1740 = vmatprep.subr.mxu0 0.0
        %v1741 = vand.u32 %v371, 4294901760
        %1742 = vmatpush1.msra.mxu0 %v1741
        %1743 = vmatprep.subr.mxu0 0.0
        %v1744 = vand.u32 %v370, 4294901760
        %1745 = vmatpush1.msra.mxu0 %v1744
        %1746 = vmatprep.subr.mxu0 0.0
        %v1747 = vand.u32 %v369, 4294901760
        %1748 = vmatpush1.msra.mxu0 %v1747
        %1749 = vmatprep.subr.mxu0 0.0
        %v1750 = vand.u32 %v368, 4294901760
        %1751 = vmatpush1.msra.mxu0 %v1750
        %1752 = vmatprep.subr.mxu0 0.0
        %v1753 = vand.u32 %v367, 4294901760
        %1754 = vmatpush1.msra.mxu0 %v1753
        %1755 = vmatprep.subr.mxu0 0.0
        %v1756 = vand.u32 %v366, 4294901760
        %1757 = vmatpush1.msra.mxu0 %v1756
        %1758 = vmatprep.subr.mxu0 0.0
        %v1759 = vand.u32 %v365, 4294901760
        %1760 = vmatpush1.msra.mxu0 %v1759
        %1761 = vmatprep.subr.mxu0 0.0
        %v1762 = vand.u32 %v364, 4294901760
        %1763 = vmatpush1.msra.mxu0 %v1762
        %1764 = vmatprep.subr.mxu0 0.0
        %v1765 = vand.u32 %v363, 4294901760
        %1766 = vmatpush1.msra.mxu0 %v1765
        %1767 = vmatprep.subr.mxu0 0.0
        %v1768 = vand.u32 %v362, 4294901760
        %1769 = vmatpush1.msra.mxu0 %v1768
        %1770 = vmatprep.subr.mxu0 0.0
        %v1771 = vand.u32 %v361, 4294901760
        %1772 = vmatpush1.msra.mxu0 %v1771
        %1773 = vmatprep.subr.mxu0 0.0
        %v1774 = vand.u32 %v360, 4294901760
        %1775 = vmatpush1.msra.mxu0 %v1774
        %1776 = vmatprep.subr.mxu0 0.0
        %v1777 = vand.u32 %v359, 4294901760
        %1778 = vmatpush1.msra.mxu0 %v1777
        %1779 = vmatprep.subr.mxu0 0.0
        %v1780 = vand.u32 %v358, 4294901760
        %1781 = vmatpush1.msra.mxu0 %v1780
        %1782 = vmatprep.subr.mxu0 0.0
        %v1783 = vand.u32 %v357, 4294901760
        %1784 = vmatpush1.msra.mxu0 %v1783
        %1785 = vmatprep.subr.mxu0 0.0
        %v1786 = vand.u32 %v356, 4294901760
        %1787 = vmatpush1.msra.mxu0 %v1786
        %1788 = vmatprep.subr.mxu0 0.0
        %v1789 = vand.u32 %v387, 4294901760
        %1790 = vmatpush2.msra.mxu0 %v1789
        %1791 = vmatprep.subr.mxu0 0.0
        %v1792 = vand.u32 %v386, 4294901760
        %1793 = vmatpush2.msra.mxu0 %v1792
        %1794 = vmatprep.subr.mxu0 0.0
        %v1795 = vand.u32 %v385, 4294901760
        %1796 = vmatpush2.msra.mxu0 %v1795
        %1797 = vmatprep.subr.mxu0 0.0
        %v1798 = vand.u32 %v384, 4294901760
        %1799 = vmatpush2.msra.mxu0 %v1798
        %1800 = vmatprep.subr.mxu0 0.0
        %v1801 = vand.u32 %v383, 4294901760
        %1802 = vmatpush2.msra.mxu0 %v1801
        %1803 = vmatprep.subr.mxu0 0.0
        %v1804 = vand.u32 %v382, 4294901760
        %1805 = vmatpush2.msra.mxu0 %v1804
        %1806 = vmatprep.subr.mxu0 0.0
        %v1807 = vand.u32 %v381, 4294901760
        %1808 = vmatpush2.msra.mxu0 %v1807
        %1809 = vmatprep.subr.mxu0 0.0
        %v1810 = vand.u32 %v380, 4294901760
        %1811 = vmatpush2.msra.mxu0 %v1810
        %1812 = vmatprep.subr.mxu0 0.0
        %v1813 = vand.u32 %v379, 4294901760
        %1814 = vmatpush2.msra.mxu0 %v1813
        %1815 = vmatprep.subr.mxu0 0.0
        %v1816 = vand.u32 %v378, 4294901760
        %1817 = vmatpush2.msra.mxu0 %v1816
        %1818 = vmatprep.subr.mxu0 0.0
        %v1819 = vand.u32 %v377, 4294901760
        %1820 = vmatpush2.msra.mxu0 %v1819
        %1821 = vmatprep.subr.mxu0 0.0
        %v1822 = vand.u32 %v376, 4294901760
        %1823 = vmatpush2.msra.mxu0 %v1822
        %1824 = vmatprep.subr.mxu0 0.0
        %v1825 = vand.u32 %v375, 4294901760
        %1826 = vmatpush2.msra.mxu0 %v1825
        %1827 = vmatprep.subr.mxu0 0.0
        %v1828 = vand.u32 %v374, 4294901760
        %1829 = vmatpush2.msra.mxu0 %v1828
        %1830 = vmatprep.subr.mxu0 0.0
        %v1831 = vand.u32 %v373, 4294901760
        %1832 = vmatpush2.msra.mxu0 %v1831
        %1833 = vmatprep.subr.mxu0 0.0
        %v1834 = vand.u32 %v372, 4294901760
        %1835 = vmatpush2.msra.mxu0 %v1834
        %v1836 = vand.u32 %v1256, 4294901760
        %v1837 = vsub.f32 %v1256, %v1836
        %v1838 = vand.u32 %v1837, 4294901760
        %1839 = vmatprep.mubr.f32.mxu0 %v1838
        %v1840 = vand.u32 %v1255, 4294901760
        %v1841 = vsub.f32 %v1255, %v1840
        %v1842 = vand.u32 %v1841, 4294901760
        %1843 = vmatmul.mubr.f32.gmra.mxu0 %v1842
        %v1844 = vpop.f32.mrf.mxu0
        %v1845 = vadd.f32 %v1737, %v1844
        %v1846 = vpop.f32.mrf.mxu0
        %1847 = vdwg.mxu0
        %1848 = vmatprep.subr.mxu0 0.0
        %v1849 = vand.u32 %v371, 4294901760
        %v1850 = vsub.f32 %v371, %v1849
        %v1851 = vand.u32 %v1850, 4294901760
        %1852 = vmatpush1.msra.mxu0 %v1851
        %1853 = vmatprep.subr.mxu0 0.0
        %v1854 = vand.u32 %v370, 4294901760
        %v1855 = vsub.f32 %v370, %v1854
        %v1856 = vand.u32 %v1855, 4294901760
        %1857 = vmatpush1.msra.mxu0 %v1856
        %1858 = vmatprep.subr.mxu0 0.0
        %v1859 = vand.u32 %v369, 4294901760
        %v1860 = vsub.f32 %v369, %v1859
        %v1861 = vand.u32 %v1860, 4294901760
        %1862 = vmatpush1.msra.mxu0 %v1861
        %1863 = vmatprep.subr.mxu0 0.0
        %v1864 = vand.u32 %v368, 4294901760
        %v1865 = vsub.f32 %v368, %v1864
        %v1866 = vand.u32 %v1865, 4294901760
        %1867 = vmatpush1.msra.mxu0 %v1866
        %1868 = vmatprep.subr.mxu0 0.0
        %v1869 = vand.u32 %v367, 4294901760
        %v1870 = vsub.f32 %v367, %v1869
        %v1871 = vand.u32 %v1870, 4294901760
        %1872 = vmatpush1.msra.mxu0 %v1871
        %1873 = vmatprep.subr.mxu0 0.0
        %v1874 = vand.u32 %v366, 4294901760
        %v1875 = vsub.f32 %v366, %v1874
        %v1876 = vand.u32 %v1875, 4294901760
        %1877 = vmatpush1.msra.mxu0 %v1876
        %1878 = vmatprep.subr.mxu0 0.0
        %v1879 = vand.u32 %v365, 4294901760
        %v1880 = vsub.f32 %v365, %v1879
        %v1881 = vand.u32 %v1880, 4294901760
        %1882 = vmatpush1.msra.mxu0 %v1881
        %1883 = vmatprep.subr.mxu0 0.0
        %v1884 = vand.u32 %v364, 4294901760
        %v1885 = vsub.f32 %v364, %v1884
        %v1886 = vand.u32 %v1885, 4294901760
        %1887 = vmatpush1.msra.mxu0 %v1886
        %1888 = vmatprep.subr.mxu0 0.0
        %v1889 = vand.u32 %v363, 4294901760
        %v1890 = vsub.f32 %v363, %v1889
        %v1891 = vand.u32 %v1890, 4294901760
        %1892 = vmatpush1.msra.mxu0 %v1891
        %1893 = vmatprep.subr.mxu0 0.0
        %v1894 = vand.u32 %v362, 4294901760
        %v1895 = vsub.f32 %v362, %v1894
        %v1896 = vand.u32 %v1895, 4294901760
        %1897 = vmatpush1.msra.mxu0 %v1896
        %1898 = vmatprep.subr.mxu0 0.0
        %v1899 = vand.u32 %v361, 4294901760
        %v1900 = vsub.f32 %v361, %v1899
        %v1901 = vand.u32 %v1900, 4294901760
        %1902 = vmatpush1.msra.mxu0 %v1901
        %1903 = vmatprep.subr.mxu0 0.0
        %v1904 = vand.u32 %v360, 4294901760
        %v1905 = vsub.f32 %v360, %v1904
        %v1906 = vand.u32 %v1905, 4294901760
        %1907 = vmatpush1.msra.mxu0 %v1906
        %1908 = vmatprep.subr.mxu0 0.0
        %v1909 = vand.u32 %v359, 4294901760
        %v1910 = vsub.f32 %v359, %v1909
        %v1911 = vand.u32 %v1910, 4294901760
        %1912 = vmatpush1.msra.mxu0 %v1911
        %1913 = vmatprep.subr.mxu0 0.0
        %v1914 = vand.u32 %v358, 4294901760
        %v1915 = vsub.f32 %v358, %v1914
        %v1916 = vand.u32 %v1915, 4294901760
        %1917 = vmatpush1.msra.mxu0 %v1916
        %1918 = vmatprep.subr.mxu0 0.0
        %v1919 = vand.u32 %v357, 4294901760
        %v1920 = vsub.f32 %v357, %v1919
        %v1921 = vand.u32 %v1920, 4294901760
        %1922 = vmatpush1.msra.mxu0 %v1921
        %1923 = vmatprep.subr.mxu0 0.0
        %v1924 = vand.u32 %v356, 4294901760
        %v1925 = vsub.f32 %v356, %v1924
        %v1926 = vand.u32 %v1925, 4294901760
        %1927 = vmatpush1.msra.mxu0 %v1926
        %1928 = vmatprep.subr.mxu0 0.0
        %v1929 = vand.u32 %v387, 4294901760
        %v1930 = vsub.f32 %v387, %v1929
        %v1931 = vand.u32 %v1930, 4294901760
        %1932 = vmatpush2.msra.mxu0 %v1931
        %1933 = vmatprep.subr.mxu0 0.0
        %v1934 = vand.u32 %v386, 4294901760
        %v1935 = vsub.f32 %v386, %v1934
        %v1936 = vand.u32 %v1935, 4294901760
        %1937 = vmatpush2.msra.mxu0 %v1936
        %1938 = vmatprep.subr.mxu0 0.0
        %v1939 = vand.u32 %v385, 4294901760
        %v1940 = vsub.f32 %v385, %v1939
        %v1941 = vand.u32 %v1940, 4294901760
        %1942 = vmatpush2.msra.mxu0 %v1941
        %1943 = vmatprep.subr.mxu0 0.0
        %v1944 = vand.u32 %v384, 4294901760
        %v1945 = vsub.f32 %v384, %v1944
        %v1946 = vand.u32 %v1945, 4294901760
        %1947 = vmatpush2.msra.mxu0 %v1946
        %1948 = vmatprep.subr.mxu0 0.0
        %v1949 = vand.u32 %v383, 4294901760
        %v1950 = vsub.f32 %v383, %v1949
        %v1951 = vand.u32 %v1950, 4294901760
        %1952 = vmatpush2.msra.mxu0 %v1951
        %1953 = vmatprep.subr.mxu0 0.0
        %v1954 = vand.u32 %v382, 4294901760
        %v1955 = vsub.f32 %v382, %v1954
        %v1956 = vand.u32 %v1955, 4294901760
        %1957 = vmatpush2.msra.mxu0 %v1956
        %1958 = vmatprep.subr.mxu0 0.0
        %v1959 = vand.u32 %v381, 4294901760
        %v1960 = vsub.f32 %v381, %v1959
        %v1961 = vand.u32 %v1960, 4294901760
        %1962 = vmatpush2.msra.mxu0 %v1961
        %1963 = vmatprep.subr.mxu0 0.0
        %v1964 = vand.u32 %v380, 4294901760
        %v1965 = vsub.f32 %v380, %v1964
        %v1966 = vand.u32 %v1965, 4294901760
        %1967 = vmatpush2.msra.mxu0 %v1966
        %1968 = vmatprep.subr.mxu0 0.0
        %v1969 = vand.u32 %v379, 4294901760
        %v1970 = vsub.f32 %v379, %v1969
        %v1971 = vand.u32 %v1970, 4294901760
        %1972 = vmatpush2.msra.mxu0 %v1971
        %1973 = vmatprep.subr.mxu0 0.0
        %v1974 = vand.u32 %v378, 4294901760
        %v1975 = vsub.f32 %v378, %v1974
        %v1976 = vand.u32 %v1975, 4294901760
        %1977 = vmatpush2.msra.mxu0 %v1976
        %1978 = vmatprep.subr.mxu0 0.0
        %v1979 = vand.u32 %v377, 4294901760
        %v1980 = vsub.f32 %v377, %v1979
        %v1981 = vand.u32 %v1980, 4294901760
        %1982 = vmatpush2.msra.mxu0 %v1981
        %1983 = vmatprep.subr.mxu0 0.0
        %v1984 = vand.u32 %v376, 4294901760
        %v1985 = vsub.f32 %v376, %v1984
        %v1986 = vand.u32 %v1985, 4294901760
        %1987 = vmatpush2.msra.mxu0 %v1986
        %1988 = vmatprep.subr.mxu0 0.0
        %v1989 = vand.u32 %v375, 4294901760
        %v1990 = vsub.f32 %v375, %v1989
        %v1991 = vand.u32 %v1990, 4294901760
        %1992 = vmatpush2.msra.mxu0 %v1991
        %1993 = vmatprep.subr.mxu0 0.0
        %v1994 = vand.u32 %v374, 4294901760
        %v1995 = vsub.f32 %v374, %v1994
        %v1996 = vand.u32 %v1995, 4294901760
        %1997 = vmatpush2.msra.mxu0 %v1996
        %1998 = vmatprep.subr.mxu0 0.0
        %v1999 = vand.u32 %v373, 4294901760
        %v2000 = vsub.f32 %v373, %v1999
        %v2001 = vand.u32 %v2000, 4294901760
        %2002 = vmatpush2.msra.mxu0 %v2001
        %2003 = vmatprep.subr.mxu0 0.0
        %v2004 = vand.u32 %v372, 4294901760
        %v2005 = vsub.f32 %v372, %v2004
        %v2006 = vand.u32 %v2005, 4294901760
        %2007 = vmatpush2.msra.mxu0 %v2006
        %v2008 = vand.u32 %v1256, 4294901760
        %2009 = vmatprep.mubr.f32.mxu0 %v2008
        %v2010 = vand.u32 %v1255, 4294901760
        %2011 = vmatmul.mubr.f32.gmra.mxu0 %v2010
        %v2012 = vpop.f32.mrf.mxu0
        %v2013 = vadd.f32 %v1845, %v2012
        %v2014 = vpop.f32.mrf.mxu0
        %2015 = vdwg.mxu0
        %2016 = vmatprep.subr.mxu0 0.0
        %v2017 = vand.u32 %v371, 4294901760
        %2018 = vmatpush1.msra.mxu0 %v2017
        %2019 = vmatprep.subr.mxu0 0.0
        %v2020 = vand.u32 %v370, 4294901760
        %2021 = vmatpush1.msra.mxu0 %v2020
        %2022 = vmatprep.subr.mxu0 0.0
        %v2023 = vand.u32 %v369, 4294901760
        %2024 = vmatpush1.msra.mxu0 %v2023
        %2025 = vmatprep.subr.mxu0 0.0
        %v2026 = vand.u32 %v368, 4294901760
        %2027 = vmatpush1.msra.mxu0 %v2026
        %2028 = vmatprep.subr.mxu0 0.0
        %v2029 = vand.u32 %v367, 4294901760
        %2030 = vmatpush1.msra.mxu0 %v2029
        %2031 = vmatprep.subr.mxu0 0.0
        %v2032 = vand.u32 %v366, 4294901760
        %2033 = vmatpush1.msra.mxu0 %v2032
        %2034 = vmatprep.subr.mxu0 0.0
        %v2035 = vand.u32 %v365, 4294901760
        %2036 = vmatpush1.msra.mxu0 %v2035
        %2037 = vmatprep.subr.mxu0 0.0
        %v2038 = vand.u32 %v364, 4294901760
        %2039 = vmatpush1.msra.mxu0 %v2038
        %2040 = vmatprep.subr.mxu0 0.0
        %v2041 = vand.u32 %v363, 4294901760
        %2042 = vmatpush1.msra.mxu0 %v2041
        %2043 = vmatprep.subr.mxu0 0.0
        %v2044 = vand.u32 %v362, 4294901760
        %2045 = vmatpush1.msra.mxu0 %v2044
        %2046 = vmatprep.subr.mxu0 0.0
        %v2047 = vand.u32 %v361, 4294901760
        %2048 = vmatpush1.msra.mxu0 %v2047
        %2049 = vmatprep.subr.mxu0 0.0
        %v2050 = vand.u32 %v360, 4294901760
        %2051 = vmatpush1.msra.mxu0 %v2050
        %2052 = vmatprep.subr.mxu0 0.0
        %v2053 = vand.u32 %v359, 4294901760
        %2054 = vmatpush1.msra.mxu0 %v2053
        %2055 = vmatprep.subr.mxu0 0.0
        %v2056 = vand.u32 %v358, 4294901760
        %2057 = vmatpush1.msra.mxu0 %v2056
        %2058 = vmatprep.subr.mxu0 0.0
        %v2059 = vand.u32 %v357, 4294901760
        %2060 = vmatpush1.msra.mxu0 %v2059
        %2061 = vmatprep.subr.mxu0 0.0
        %v2062 = vand.u32 %v356, 4294901760
        %2063 = vmatpush1.msra.mxu0 %v2062
        %2064 = vmatprep.subr.mxu0 0.0
        %v2065 = vand.u32 %v387, 4294901760
        %2066 = vmatpush2.msra.mxu0 %v2065
        %2067 = vmatprep.subr.mxu0 0.0
        %v2068 = vand.u32 %v386, 4294901760
        %2069 = vmatpush2.msra.mxu0 %v2068
        %2070 = vmatprep.subr.mxu0 0.0
        %v2071 = vand.u32 %v385, 4294901760
        %2072 = vmatpush2.msra.mxu0 %v2071
        %2073 = vmatprep.subr.mxu0 0.0
        %v2074 = vand.u32 %v384, 4294901760
        %2075 = vmatpush2.msra.mxu0 %v2074
        %2076 = vmatprep.subr.mxu0 0.0
        %v2077 = vand.u32 %v383, 4294901760
        %2078 = vmatpush2.msra.mxu0 %v2077
        %2079 = vmatprep.subr.mxu0 0.0
        %v2080 = vand.u32 %v382, 4294901760
        %2081 = vmatpush2.msra.mxu0 %v2080
        %2082 = vmatprep.subr.mxu0 0.0
        %v2083 = vand.u32 %v381, 4294901760
        %2084 = vmatpush2.msra.mxu0 %v2083
        %2085 = vmatprep.subr.mxu0 0.0
        %v2086 = vand.u32 %v380, 4294901760
        %2087 = vmatpush2.msra.mxu0 %v2086
        %2088 = vmatprep.subr.mxu0 0.0
        %v2089 = vand.u32 %v379, 4294901760
        %2090 = vmatpush2.msra.mxu0 %v2089
        %2091 = vmatprep.subr.mxu0 0.0
        %v2092 = vand.u32 %v378, 4294901760
        %2093 = vmatpush2.msra.mxu0 %v2092
        %2094 = vmatprep.subr.mxu0 0.0
        %v2095 = vand.u32 %v377, 4294901760
        %2096 = vmatpush2.msra.mxu0 %v2095
        %2097 = vmatprep.subr.mxu0 0.0
        %v2098 = vand.u32 %v376, 4294901760
        %2099 = vmatpush2.msra.mxu0 %v2098
        %2100 = vmatprep.subr.mxu0 0.0
        %v2101 = vand.u32 %v375, 4294901760
        %2102 = vmatpush2.msra.mxu0 %v2101
        %2103 = vmatprep.subr.mxu0 0.0
        %v2104 = vand.u32 %v374, 4294901760
        %2105 = vmatpush2.msra.mxu0 %v2104
        %2106 = vmatprep.subr.mxu0 0.0
        %v2107 = vand.u32 %v373, 4294901760
        %2108 = vmatpush2.msra.mxu0 %v2107
        %2109 = vmatprep.subr.mxu0 0.0
        %v2110 = vand.u32 %v372, 4294901760
        %2111 = vmatpush2.msra.mxu0 %v2110
        %v2112 = vand.u32 %v1256, 4294901760
        %2113 = vmatprep.mubr.f32.mxu0 %v2112
        %v2114 = vand.u32 %v1255, 4294901760
        %2115 = vmatmul.mubr.f32.gmra.mxu0 %v2114
        %v2116 = vpop.f32.mrf.mxu0
        %v2117 = vadd.f32 %v2013, %v2116
        %v2118 = vpop.f32.mrf.mxu0
        %2119 = vdwg.mxu0
        %v2120 = vadd.f32 %v1257, %v2117
        %2121 = vst [vmem:[#allocation2] sm:$0xff] %v2120
        // Predicated region
        $region57: #{tpu_custom_call.1} parent=39 // pred_check
          %p2122 = pneg %p318
        $region58: #{tpu_custom_call.1} parent=39 // pred_check_branch
          %2124 = sbr.rel (%p2122) target = $region60
        $region59: #{tpu_custom_call.1} parent=39 // pred_region
          %v2125 = vld [vmem:[#allocation2] sm:$0xff]
          %v2126 = vld [vmem:[%s4] sm:$0x1]
          %v2128 = vlaneseq
          %v2129 = vshrl.u32 %v2128, 7
          %v2130 = vsub.s32 0, %v2129
          %v2131 = vrot.slane %v2126, %v2130
          %v2133 = vadd.f32 %v2125, %v2131
          %2134 = vst [vmem:[%s310] sm:$0xff] %v2133
        $region60: #{tpu_custom_call.1} parent=39 // pred_fallthru
          _
        %s2135 = sand.u32 %s168, 1
        %s2136 = scalar_lea.sflag [#allocation5], %s2135
        %s2137 = sand.u32 %s168, 1
        %s2138 = smul.addr %s2137, 8
        %s2139 = scalar_lea.vmem [#allocation9], %s2138
        // Predicated region
        $region61: #{tpu_custom_call.1} parent=39 // pred_check
          %p2140 = pneg %p178
        $region62: #{tpu_custom_call.1} parent=39 // pred_check_branch
          %2142 = sbr.rel (%p2140) target = $region64
        $region63: #{tpu_custom_call.1} parent=39 // pred_region
          %s2144 = ssub.s32 128, 128
          %2145 = vsyncadd %s2136, %s2144
          %s2146 = smul.addr %s27, 128
          %s2147 = scalar_lea.hbm %s5, %s2146
          %s2149 = sshll.u32 %s2139, 4
          %s2150 = int_to_ptr.vmem [resolvable:$true] %s2149
          %2152 = dma.vmem_to_hbm [thread:$0]  %s2150, 128, %s2147, %s2136
        $region64: #{tpu_custom_call.1} parent=39 // pred_fallthru
          _
      $region40: #{tpu_custom_call.1} parent=5 // pred_fallthru
        _
      %p2153 = scmp.le.s32.totalorder 2, %s18
      // Predicated region
      $region65: #{tpu_custom_call.1} parent=5 // pred_check
        %p2154 = pneg %p2153
      $region66: #{tpu_custom_call.1} parent=5 // pred_check_branch
        %2156 = sbr.rel (%p2154) target = $region68
      $region67: #{tpu_custom_call.1} parent=5 // pred_region
        %s2157 = ssub.s32 %s18, 2
        // Predicated region
        $region69: #{tpu_custom_call.1} parent=67 // pred_check
          %p2158 = pneg %p184
        $region70: #{tpu_custom_call.1} parent=67 // pred_check_branch
          %2160 = sbr.rel (%p2158) target = $region72
        $region71: #{tpu_custom_call.1} parent=67 // pred_region
          %s2161 = sand.u32 %s169, 1
          %s2162 = scalar_lea.sflag [#allocation5], %s2161
          %s2163 = sand.u32 %s169, 1
          %s2164 = smul.addr %s2163, 8
          %s2165 = scalar_lea.vmem [#allocation9], %s2164
          %2166 = dma.done %s2162, 128
        $region72: #{tpu_custom_call.1} parent=67 // pred_fallthru
          _
      $region68: #{tpu_custom_call.1} parent=5 // pred_fallthru
        _
    $region6: #{tpu_custom_call.1} parent=1 // loop_footer
      %s22 = sadd.s32 1, %s18
    $region7: #{tpu_custom_call.1} parent=1 // loop_footer_branch
      %17 = sbr.rel target = $region3
    $region8: #{tpu_custom_call.1} parent=1 // loop_exit
      _
    %2167 = vsyncpa [#allocation4], 1
    %s2168 = scalar_lea.sflag [#allocation4], 1
    %2169 = vsyncpa %s2168, 1
    %2170 = vsyncpa [#allocation7], 1
    %2171 = vsyncpa [#allocation5], 1
    %s2172 = scalar_lea.sflag [#allocation5], 1
    %2173 = vsyncpa %s2172, 1

</llo_original>
